<compile_context>
chip_gen: v5e
topology: v5e:2x2
jax: 0.10.0
libtpu: 0.0.40
codegen_flags: <defaults>
</compile_context>

<pallas_src>
import functools

import jax
import jax.numpy as jnp
from jax import lax
from jax.experimental import pallas as pl
from jax.experimental.pallas import tpu as pltpu


def _bilstm_kernel(x_ref, wih_ref, b_ref, whh_ref,
                   yf_ref, yb_ref, h_ref, c_ref, pre_s):
    """Bidirectional single-layer LSTM recurrence, fully inside the kernel.

    x_ref:   (T*Bp, E)   time-major, batch padded to a sublane multiple
    wih_ref: (E, 8H)     input weights, columns [fwd i,f,o,g | bwd i,f,o,g]
    b_ref:   (1, 8H)     combined (b_ih + b_hh) biases, same column order
    whh_ref: (2H, 8H)    block-diag recurrent weights:
                           [0:H, 0:4H]   = whh_fwd (cols i,f,o,g)
                           [H:2H,4H:8H]  = whh_bwd (cols i,f,o,g)
    yf_ref:  (T*Bp, H)   forward hidden states, row block t = h_fwd(t)
    yb_ref:  (T*Bp, H)   backward hidden states, row block t = h_bwd(t)
    h_ref:   (Bp, 2H)    final hidden state [fwd | bwd]
    c_ref:   (Bp, 2H)    final cell state   [fwd | bwd]
    pre_s:   (T*Bp, 8H)  scratch for the hoisted input projection
    """
    Bp = h_ref.shape[0]
    H = whh_ref.shape[0] // 2
    G = 4 * H
    T = x_ref.shape[0] // Bp

    # (1) Hoisted input projection: one large MXU GEMM for both directions,
    #     bias folded in (no per-step bias broadcast).
    pre_s[...] = (jnp.dot(x_ref[...], wih_ref[...],
                          preferred_element_type=jnp.float32)
                  + b_ref[...])

    # Block-diagonal recurrent weight, loaded once.  (For realistic H this is
    # VMEM-resident, not vreg-resident; the per-step dot re-reads it from VMEM.)
    whh = whh_ref[...]

    def cell(gates, c):
        # Gate order [i, f, o, g]: one EUP tanh covers the 3H sigmoid columns,
        # one EUP tanh covers the H-wide g columns (no double tanh of g).
        s = 0.5 * (jnp.tanh(0.5 * gates[:, 0:3 * H]) + 1.0)
        i, f, o = s[:, 0:H], s[:, H:2 * H], s[:, 2 * H:3 * H]
        g = jnp.tanh(gates[:, 3 * H:G])
        c_new = f * c + i * g
        h_new = o * jnp.tanh(c_new)
        return h_new, c_new

    z = jnp.zeros((Bp, H), jnp.float32)
    h_f, c_f, h_b, c_b = z, z, z, z

    # (2) Forward and backward directions share ONE block-diagonal recurrent
    #     matmul per step.  T is static & small -> fully unrolled Python loop
    #     (gives the scheduler cross-iteration visibility).
    for t in range(T):
        tb = T - 1 - t
        rf = slice(t * Bp, (t + 1) * Bp)
        rb = slice(tb * Bp, (tb + 1) * Bp)

        hh = jnp.concatenate([h_f, h_b], axis=1)                   # (Bp, 2H)
        rec = jnp.dot(hh, whh, preferred_element_type=jnp.float32)  # (Bp, 8H)

        gates_f = pre_s[rf, 0:G] + rec[:, 0:G]
        gates_b = pre_s[rb, G:2 * G] + rec[:, G:2 * G]
        h_f, c_f = cell(gates_f, c_f)
        h_b, c_b = cell(gates_b, c_b)

        # Separate per-direction output slabs: no shared-tile masked RMW.
        yf_ref[rf, :] = h_f.astype(yf_ref.dtype)
        yb_ref[rb, :] = h_b.astype(yb_ref.dtype)

    # Final states (single one-time partial stores; negligible).
    h_ref[:, 0:H] = h_f
    h_ref[:, H:2 * H] = h_b
    c_ref[:, 0:H] = c_f
    c_ref[:, H:2 * H] = c_b


def _vmem_cap_bytes():
    """Physical VMEM capacity of the attached TPU (fallback: v7x's 64 MiB)."""
    try:
        return int(pltpu.get_tpu_info().vmem_capacity_bytes)
    except Exception:
        return 64 << 20


def encoder_forward(x, params):
    """Mirrors _Encoder.forward with mask=None, num_layers=1, bidirectional=True."""
    # TODO(synk): dropout is a no-op (p=0.0 / eval mode); the mask /
    # pack_padded_sequence path is not implemented.
    B, T, E = x.shape
    H = params["whh"].shape[0] // 2
    f32 = jnp.float32

    # Pad the batch to a sublane multiple so every per-step tile is aligned and
    # the (T, Bp, .) <-> (T*Bp, .) flattening is layout-trivial.
    Bp = max(8, ((B + 7) // 8) * 8)
    xp = x.astype(f32)
    if Bp != B:
        xp = jnp.pad(xp, ((0, Bp - B), (0, 0), (0, 0)))
    x2d = jnp.transpose(xp, (1, 0, 2)).reshape(T * Bp, E)   # time-major slab

    # VMEM budget (no grid -> everything resident once, no double buffering).
    vmem_bytes = 4 * (T * Bp * (E + 8 * H + 2 * H)           # x, pre scratch, y
                      + E * 8 * H + 8 * H + 2 * H * 8 * H    # weights + bias
                      + 4 * Bp * H)                          # final h, c
    cap = _vmem_cap_bytes()
    vmem_limit = int(min(max(2 * vmem_bytes, 4 << 20), (3 * cap) // 4))

    vmem = functools.partial(pl.BlockSpec, memory_space=pltpu.MemorySpace.VMEM)
    y_f2, y_b2, h_n, c_n = pl.pallas_call(
        _bilstm_kernel,
        out_shape=(
            jax.ShapeDtypeStruct((T * Bp, H), f32),   # fwd hidden slab
            jax.ShapeDtypeStruct((T * Bp, H), f32),   # bwd hidden slab
            jax.ShapeDtypeStruct((Bp, 2 * H), f32),   # final h [fwd|bwd]
            jax.ShapeDtypeStruct((Bp, 2 * H), f32),   # final c [fwd|bwd]
        ),
        in_specs=[vmem()] * 4,
        out_specs=(vmem(), vmem(), vmem(), vmem()),
        scratch_shapes=[pltpu.VMEM((T * Bp, 8 * H), jnp.float32)],
        compiler_params=pltpu.CompilerParams(vmem_limit_bytes=vmem_limit),
    )(x2d, params["wih"], params["b"], params["whh"])

    # Epilogue: concat fwd/bwd halves, back to batch-major, drop batch padding.
    y = jnp.concatenate([y_f2.reshape(T, Bp, H), y_b2.reshape(T, Bp, H)],
                        axis=-1)
    y = jnp.transpose(y, (1, 0, 2))[:B]
    h_cat = h_n[:B]
    c_cat = c_n[:B]
    hiddens = ((h_cat, c_cat),)
    return y, hiddens


# ----------------------------------------------------------------------------
# Parameter construction
# ----------------------------------------------------------------------------

def init_torch_lstm_weights(key, embdim, hdim):
    """Deterministic init matching torch.nn.LSTM default U(-1/sqrt(H), 1/sqrt(H)),
    in torch's native layout: weight_ih (4H, E), weight_hh (4H, H), gate order
    [i, f, g, o], per direction."""
    k = hdim ** -0.5
    keys = jax.random.split(key, 8)

    def u(kk, shape):
        return jax.random.uniform(kk, shape, jnp.float32, -k, k)

    return dict(
        wih_f=u(keys[0], (4 * hdim, embdim)),
        whh_f=u(keys[1], (4 * hdim, hdim)),
        b_f=u(keys[2], (4 * hdim,)) + u(keys[3], (4 * hdim,)),
        wih_b=u(keys[4], (4 * hdim, embdim)),
        whh_b=u(keys[5], (4 * hdim, hdim)),
        b_b=u(keys[6], (4 * hdim,)) + u(keys[7], (4 * hdim,)),
    )


def _reorder_ifgo_to_ifog(w, hdim):
    """Reorder the last axis from torch gate order [i,f,g,o] to [i,f,o,g]."""
    i = w[..., 0:hdim]
    f = w[..., hdim:2 * hdim]
    g = w[..., 2 * hdim:3 * hdim]
    o = w[..., 3 * hdim:4 * hdim]
    return jnp.concatenate([i, f, o, g], axis=-1)


def pack_params(raw, hdim):
    """Kernel layout:
      wih: (E, 8H)  columns [fwd i,f,o,g | bwd i,f,o,g]
      b:   (1, 8H)  combined b_ih + b_hh, same column order
      whh: (2H, 8H) block-diag: [0:H,0:4H]=whh_fwd, [H:2H,4H:8H]=whh_bwd
    """
    H = hdim
    G = 4 * H
    wih = jnp.concatenate([_reorder_ifgo_to_ifog(raw["wih_f"].T, H),
                           _reorder_ifgo_to_ifog(raw["wih_b"].T, H)], axis=1)
    b = jnp.concatenate([_reorder_ifgo_to_ifog(raw["b_f"], H),
                         _reorder_ifgo_to_ifog(raw["b_b"], H)])[None, :]
    whh_f = _reorder_ifgo_to_ifog(raw["whh_f"].T, H)   # (H, 4H)
    whh_b = _reorder_ifgo_to_ifog(raw["whh_b"].T, H)   # (H, 4H)
    whh = jnp.zeros((2 * H, 2 * G), jnp.float32)
    whh = whh.at[0:H, 0:G].set(whh_f).at[H:2 * H, G:2 * G].set(whh_b)
    return dict(wih=wih, b=b, whh=whh)


# ----------------------------------------------------------------------------
# Pure-JAX reference (correctness check only), torch gate order [i,f,g,o]
# ----------------------------------------------------------------------------

def _lstm_dir_ref(x, wih_t, whh_t, b, reverse):
    B, T, E = x.shape
    H = whh_t.shape[1]
    wih = wih_t.T   # (E, 4H)
    whh = whh_t.T   # (H, 4H)

    def step(carry, x_t):
        h, c = carry
        gates = x_t @ wih + h @ whh + b
        i = jax.nn.sigmoid(gates[:, 0:H])
        f = jax.nn.sigmoid(gates[:, H:2 * H])
        g = jnp.tanh(gates[:, 2 * H:3 * H])
        o = jax.nn.sigmoid(gates[:, 3 * H:4 * H])
        c = f * c + i * g
        h = o * jnp.tanh(c)
        return (h, c), h

    xs = jnp.swapaxes(x, 0, 1)
    if reverse:
        xs = xs[::-1]
    (h, c), ys = lax.scan(step, (jnp.zeros((B, H), jnp.float32),
                                 jnp.zeros((B, H), jnp.float32)), xs)
    if reverse:
        ys = ys[::-1]
    return jnp.swapaxes(ys, 0, 1), h, c


if __name__ == "__main__":
    B, T, embdim, hdim = 2, 8, 32, 32

    key = jax.random.PRNGKey(0)
    kx, kp = jax.random.split(key)
    x = jax.random.normal(kx, (B, T, embdim), jnp.float32)
    raw = init_torch_lstm_weights(kp, embdim, hdim)
    params = pack_params(raw, hdim)

    y, hiddens = encoder_forward(x, params)
    jax.block_until_ready((y, hiddens))

    # Pure-JAX reference check (torch-layout weights, torch gate order).
    yf_r, hf_r, cf_r = _lstm_dir_ref(x, raw["wih_f"], raw["whh_f"], raw["b_f"],
                                     reverse=False)
    yb_r, hb_r, cb_r = _lstm_dir_ref(x, raw["wih_b"], raw["whh_b"], raw["b_b"],
                                     reverse=True)
    y_ref = jnp.concatenate([yf_r, yb_r], axis=-1)
    h_ref = jnp.concatenate([hf_r, hb_r], axis=-1)
    c_ref = jnp.concatenate([cf_r, cb_r], axis=-1)

    assert y.shape == (B, T, 2 * hdim)
    assert hiddens[0][0].shape == (B, 2 * hdim)
    assert hiddens[0][1].shape == (B, 2 * hdim)
    assert jnp.allclose(y, y_ref, atol=1e-4), "y mismatch vs reference"
    assert jnp.allclose(hiddens[0][0], h_ref, atol=1e-4), "h mismatch vs reference"
    assert jnp.allclose(hiddens[0][1], c_ref, atol=1e-4), "c mismatch vs reference"

    print("KERNEL_OK")
</pallas_src>

<mosaic_0001>
module attributes {stable_mosaic.version = 11 : i64} {
  func.func @_bilstm_kernel(%arg0: memref<64x32xf32, #tpu.memory_space<vmem>>, %arg1: memref<32x256xf32, #tpu.memory_space<vmem>>, %arg2: memref<1x256xf32, #tpu.memory_space<vmem>>, %arg3: memref<64x256xf32, #tpu.memory_space<vmem>>, %arg4: memref<64x32xf32, #tpu.memory_space<vmem>>, %arg5: memref<64x32xf32, #tpu.memory_space<vmem>>, %arg6: memref<8x64xf32, #tpu.memory_space<vmem>>, %arg7: memref<8x64xf32, #tpu.memory_space<vmem>>, %arg8: memref<64x256xf32, #tpu.memory_space<vmem>>) attributes {dimension_semantics = [], scalar_prefetch = 0 : i64, scratch_operands = 1 : i64, tpu.core_type = #tpu.core_type<tc>} {
    %c0 = arith.constant 0 : index
    %c0_0 = arith.constant 0 : index
    %0 = vector.load %arg0[%c0, %c0_0] : memref<64x32xf32, #tpu.memory_space<vmem>>, vector<64x32xf32>
    %c0_1 = arith.constant 0 : index
    %c0_2 = arith.constant 0 : index
    %1 = vector.load %arg1[%c0_1, %c0_2] : memref<32x256xf32, #tpu.memory_space<vmem>>, vector<32x256xf32>
    %cst = arith.constant dense<0.000000e+00> : vector<64x256xf32>
    %2 = tpu.matmul %0, %1, %cst {dimension_numbers = #tpu.dot_dimension_numbers<[1], [0], [0], [1], [0, 0, 1, 1], [], []>} : vector<64x32xf32>, vector<32x256xf32>, vector<64x256xf32> -> vector<64x256xf32>
    %c0_3 = arith.constant 0 : index
    %c0_4 = arith.constant 0 : index
    %3 = vector.load %arg2[%c0_3, %c0_4] : memref<1x256xf32, #tpu.memory_space<vmem>>, vector<1x256xf32>
    %4 = vector.broadcast %3 : vector<1x256xf32> to vector<64x256xf32>
    %5 = arith.addf %2, %4 : vector<64x256xf32>
    %c0_5 = arith.constant 0 : index
    %c0_6 = arith.constant 0 : index
    %6 = vector.load %arg8[%c0_5, %c0_6] : memref<64x256xf32, #tpu.memory_space<vmem>>, vector<64x256xf32>
    tpu.vector_store %arg8[%c0_5, %c0_6], %5 {strides = array<i32>} : memref<64x256xf32, #tpu.memory_space<vmem>>, vector<64x256xf32>,
    %c0_7 = arith.constant 0 : index
    %c0_8 = arith.constant 0 : index
    %7 = vector.load %arg3[%c0_7, %c0_8] : memref<64x256xf32, #tpu.memory_space<vmem>>, vector<64x256xf32>
    %cst_9 = arith.constant 0.000000e+00 : f32
    %8 = vector.broadcast %cst_9 : f32 to vector<8x32xf32>
    %9 = tpu.concatenate %8, %8 in 1 : vector<8x32xf32>, vector<8x32xf32> -> vector<8x64xf32>
    %cst_10 = arith.constant dense<0.000000e+00> : vector<8x256xf32>
    %10 = tpu.matmul %9, %7, %cst_10 {dimension_numbers = #tpu.dot_dimension_numbers<[1], [0], [0], [1], [0, 0, 1, 1], [], []>} : vector<8x64xf32>, vector<64x256xf32>, vector<8x256xf32> -> vector<8x256xf32>
    %c0_11 = arith.constant 0 : index
    %c0_12 = arith.constant 0 : index
    %11 = vector.load %arg8[%c0_11, %c0_12] : memref<64x256xf32, #tpu.memory_space<vmem>>, vector<8x128xf32>
    %12 = vector.extract_strided_slice %10 {offsets = [0, 0], sizes = [8, 128], strides = [1, 1]} : vector<8x256xf32> to vector<8x128xf32>
    %13 = arith.addf %11, %12 : vector<8x128xf32>
    %c56 = arith.constant 56 : index
    %c128 = arith.constant 128 : index
    %14 = vector.load %arg8[%c56, %c128] : memref<64x256xf32, #tpu.memory_space<vmem>>, vector<8x128xf32>
    %15 = vector.extract_strided_slice %10 {offsets = [0, 128], sizes = [8, 128], strides = [1, 1]} : vector<8x256xf32> to vector<8x128xf32>
    %16 = arith.addf %14, %15 : vector<8x128xf32>
    %17 = vector.extract_strided_slice %13 {offsets = [0, 0], sizes = [8, 96], strides = [1, 1]} : vector<8x128xf32> to vector<8x96xf32>
    %cst_13 = arith.constant 5.000000e-01 : f32
    %18 = vector.broadcast %cst_13 : f32 to vector<8x96xf32>
    %19 = arith.mulf %18, %17 : vector<8x96xf32>
    %20 = math.tanh %19 : vector<8x96xf32>
    %cst_14 = arith.constant 1.000000e+00 : f32
    %21 = vector.broadcast %cst_14 : f32 to vector<8x96xf32>
    %22 = arith.addf %20, %21 : vector<8x96xf32>
    %cst_15 = arith.constant 5.000000e-01 : f32
    %23 = vector.broadcast %cst_15 : f32 to vector<8x96xf32>
    %24 = arith.mulf %23, %22 : vector<8x96xf32>
    %25 = vector.extract_strided_slice %24 {offsets = [0, 0], sizes = [8, 32], strides = [1, 1]} : vector<8x96xf32> to vector<8x32xf32>
    %26 = vector.extract_strided_slice %24 {offsets = [0, 32], sizes = [8, 32], strides = [1, 1]} : vector<8x96xf32> to vector<8x32xf32>
    %27 = vector.extract_strided_slice %24 {offsets = [0, 64], sizes = [8, 32], strides = [1, 1]} : vector<8x96xf32> to vector<8x32xf32>
    %28 = vector.extract_strided_slice %13 {offsets = [0, 96], sizes = [8, 32], strides = [1, 1]} : vector<8x128xf32> to vector<8x32xf32>
    %29 = math.tanh %28 : vector<8x32xf32>
    %30 = arith.mulf %26, %8 : vector<8x32xf32>
    %31 = arith.mulf %25, %29 : vector<8x32xf32>
    %32 = arith.addf %30, %31 : vector<8x32xf32>
    %33 = math.tanh %32 : vector<8x32xf32>
    %34 = arith.mulf %27, %33 : vector<8x32xf32>
    %35 = vector.extract_strided_slice %16 {offsets = [0, 0], sizes = [8, 96], strides = [1, 1]} : vector<8x128xf32> to vector<8x96xf32>
    %cst_16 = arith.constant 5.000000e-01 : f32
    %36 = vector.broadcast %cst_16 : f32 to vector<8x96xf32>
    %37 = arith.mulf %36, %35 : vector<8x96xf32>
    %38 = math.tanh %37 : vector<8x96xf32>
    %cst_17 = arith.constant 1.000000e+00 : f32
    %39 = vector.broadcast %cst_17 : f32 to vector<8x96xf32>
    %40 = arith.addf %38, %39 : vector<8x96xf32>
    %cst_18 = arith.constant 5.000000e-01 : f32
    %41 = vector.broadcast %cst_18 : f32 to vector<8x96xf32>
    %42 = arith.mulf %41, %40 : vector<8x96xf32>
    %43 = vector.extract_strided_slice %42 {offsets = [0, 0], sizes = [8, 32], strides = [1, 1]} : vector<8x96xf32> to vector<8x32xf32>
    %44 = vector.extract_strided_slice %42 {offsets = [0, 32], sizes = [8, 32], strides = [1, 1]} : vector<8x96xf32> to vector<8x32xf32>
    %45 = vector.extract_strided_slice %42 {offsets = [0, 64], sizes = [8, 32], strides = [1, 1]} : vector<8x96xf32> to vector<8x32xf32>
    %46 = vector.extract_strided_slice %16 {offsets = [0, 96], sizes = [8, 32], strides = [1, 1]} : vector<8x128xf32> to vector<8x32xf32>
    %47 = math.tanh %46 : vector<8x32xf32>
    %48 = arith.mulf %44, %8 : vector<8x32xf32>
    %49 = arith.mulf %43, %47 : vector<8x32xf32>
    %50 = arith.addf %48, %49 : vector<8x32xf32>
    %51 = math.tanh %50 : vector<8x32xf32>
    %52 = arith.mulf %45, %51 : vector<8x32xf32>
    %c0_19 = arith.constant 0 : index
    %c0_20 = arith.constant 0 : index
    %53 = vector.load %arg4[%c0_19, %c0_20] : memref<64x32xf32, #tpu.memory_space<vmem>>, vector<8x32xf32>
    tpu.vector_store %arg4[%c0_19, %c0_20], %34 {strides = array<i32>} : memref<64x32xf32, #tpu.memory_space<vmem>>, vector<8x32xf32>,
    %c56_21 = arith.constant 56 : index
    %c0_22 = arith.constant 0 : index
    %54 = vector.load %arg5[%c56_21, %c0_22] : memref<64x32xf32, #tpu.memory_space<vmem>>, vector<8x32xf32>
    tpu.vector_store %arg5[%c56_21, %c0_22], %52 {strides = array<i32>} : memref<64x32xf32, #tpu.memory_space<vmem>>, vector<8x32xf32>,
    %55 = tpu.concatenate %34, %52 in 1 : vector<8x32xf32>, vector<8x32xf32> -> vector<8x64xf32>
    %cst_23 = arith.constant dense<0.000000e+00> : vector<8x256xf32>
    %56 = tpu.matmul %55, %7, %cst_23 {dimension_numbers = #tpu.dot_dimension_numbers<[1], [0], [0], [1], [0, 0, 1, 1], [], []>} : vector<8x64xf32>, vector<64x256xf32>, vector<8x256xf32> -> vector<8x256xf32>
    %c8 = arith.constant 8 : index
    %c0_24 = arith.constant 0 : index
    %57 = vector.load %arg8[%c8, %c0_24] : memref<64x256xf32, #tpu.memory_space<vmem>>, vector<8x128xf32>
    %58 = vector.extract_strided_slice %56 {offsets = [0, 0], sizes = [8, 128], strides = [1, 1]} : vector<8x256xf32> to vector<8x128xf32>
    %59 = arith.addf %57, %58 : vector<8x128xf32>
    %c48 = arith.constant 48 : index
    %c128_25 = arith.constant 128 : index
    %60 = vector.load %arg8[%c48, %c128_25] : memref<64x256xf32, #tpu.memory_space<vmem>>, vector<8x128xf32>
    %61 = vector.extract_strided_slice %56 {offsets = [0, 128], sizes = [8, 128], strides = [1, 1]} : vector<8x256xf32> to vector<8x128xf32>
    %62 = arith.addf %60, %61 : vector<8x128xf32>
    %63 = vector.extract_strided_slice %59 {offsets = [0, 0], sizes = [8, 96], strides = [1, 1]} : vector<8x128xf32> to vector<8x96xf32>
    %cst_26 = arith.constant 5.000000e-01 : f32
    %64 = vector.broadcast %cst_26 : f32 to vector<8x96xf32>
    %65 = arith.mulf %64, %63 : vector<8x96xf32>
    %66 = math.tanh %65 : vector<8x96xf32>
    %cst_27 = arith.constant 1.000000e+00 : f32
    %67 = vector.broadcast %cst_27 : f32 to vector<8x96xf32>
    %68 = arith.addf %66, %67 : vector<8x96xf32>
    %cst_28 = arith.constant 5.000000e-01 : f32
    %69 = vector.broadcast %cst_28 : f32 to vector<8x96xf32>
    %70 = arith.mulf %69, %68 : vector<8x96xf32>
    %71 = vector.extract_strided_slice %70 {offsets = [0, 0], sizes = [8, 32], strides = [1, 1]} : vector<8x96xf32> to vector<8x32xf32>
    %72 = vector.extract_strided_slice %70 {offsets = [0, 32], sizes = [8, 32], strides = [1, 1]} : vector<8x96xf32> to vector<8x32xf32>
    %73 = vector.extract_strided_slice %70 {offsets = [0, 64], sizes = [8, 32], strides = [1, 1]} : vector<8x96xf32> to vector<8x32xf32>
    %74 = vector.extract_strided_slice %59 {offsets = [0, 96], sizes = [8, 32], strides = [1, 1]} : vector<8x128xf32> to vector<8x32xf32>
    %75 = math.tanh %74 : vector<8x32xf32>
    %76 = arith.mulf %72, %32 : vector<8x32xf32>
    %77 = arith.mulf %71, %75 : vector<8x32xf32>
    %78 = arith.addf %76, %77 : vector<8x32xf32>
    %79 = math.tanh %78 : vector<8x32xf32>
    %80 = arith.mulf %73, %79 : vector<8x32xf32>
    %81 = vector.extract_strided_slice %62 {offsets = [0, 0], sizes = [8, 96], strides = [1, 1]} : vector<8x128xf32> to vector<8x96xf32>
    %cst_29 = arith.constant 5.000000e-01 : f32
    %82 = vector.broadcast %cst_29 : f32 to vector<8x96xf32>
    %83 = arith.mulf %82, %81 : vector<8x96xf32>
    %84 = math.tanh %83 : vector<8x96xf32>
    %cst_30 = arith.constant 1.000000e+00 : f32
    %85 = vector.broadcast %cst_30 : f32 to vector<8x96xf32>
    %86 = arith.addf %84, %85 : vector<8x96xf32>
    %cst_31 = arith.constant 5.000000e-01 : f32
    %87 = vector.broadcast %cst_31 : f32 to vector<8x96xf32>
    %88 = arith.mulf %87, %86 : vector<8x96xf32>
    %89 = vector.extract_strided_slice %88 {offsets = [0, 0], sizes = [8, 32], strides = [1, 1]} : vector<8x96xf32> to vector<8x32xf32>
    %90 = vector.extract_strided_slice %88 {offsets = [0, 32], sizes = [8, 32], strides = [1, 1]} : vector<8x96xf32> to vector<8x32xf32>
    %91 = vector.extract_strided_slice %88 {offsets = [0, 64], sizes = [8, 32], strides = [1, 1]} : vector<8x96xf32> to vector<8x32xf32>
    %92 = vector.extract_strided_slice %62 {offsets = [0, 96], sizes = [8, 32], strides = [1, 1]} : vector<8x128xf32> to vector<8x32xf32>
    %93 = math.tanh %92 : vector<8x32xf32>
    %94 = arith.mulf %90, %50 : vector<8x32xf32>
    %95 = arith.mulf %89, %93 : vector<8x32xf32>
    %96 = arith.addf %94, %95 : vector<8x32xf32>
    %97 = math.tanh %96 : vector<8x32xf32>
    %98 = arith.mulf %91, %97 : vector<8x32xf32>
    %c8_32 = arith.constant 8 : index
    %c0_33 = arith.constant 0 : index
    %99 = vector.load %arg4[%c8_32, %c0_33] : memref<64x32xf32, #tpu.memory_space<vmem>>, vector<8x32xf32>
    tpu.vector_store %arg4[%c8_32, %c0_33], %80 {strides = array<i32>} : memref<64x32xf32, #tpu.memory_space<vmem>>, vector<8x32xf32>,
    %c48_34 = arith.constant 48 : index
    %c0_35 = arith.constant 0 : index
    %100 = vector.load %arg5[%c48_34, %c0_35] : memref<64x32xf32, #tpu.memory_space<vmem>>, vector<8x32xf32>
    tpu.vector_store %arg5[%c48_34, %c0_35], %98 {strides = array<i32>} : memref<64x32xf32, #tpu.memory_space<vmem>>, vector<8x32xf32>,
    %101 = tpu.concatenate %80, %98 in 1 : vector<8x32xf32>, vector<8x32xf32> -> vector<8x64xf32>
    %cst_36 = arith.constant dense<0.000000e+00> : vector<8x256xf32>
    %102 = tpu.matmul %101, %7, %cst_36 {dimension_numbers = #tpu.dot_dimension_numbers<[1], [0], [0], [1], [0, 0, 1, 1], [], []>} : vector<8x64xf32>, vector<64x256xf32>, vector<8x256xf32> -> vector<8x256xf32>
    %c16 = arith.constant 16 : index
    %c0_37 = arith.constant 0 : index
    %103 = vector.load %arg8[%c16, %c0_37] : memref<64x256xf32, #tpu.memory_space<vmem>>, vector<8x128xf32>
    %104 = vector.extract_strided_slice %102 {offsets = [0, 0], sizes = [8, 128], strides = [1, 1]} : vector<8x256xf32> to vector<8x128xf32>
    %105 = arith.addf %103, %104 : vector<8x128xf32>
    %c40 = arith.constant 40 : index
    %c128_38 = arith.constant 128 : index
    %106 = vector.load %arg8[%c40, %c128_38] : memref<64x256xf32, #tpu.memory_space<vmem>>, vector<8x128xf32>
    %107 = vector.extract_strided_slice %102 {offsets = [0, 128], sizes = [8, 128], strides = [1, 1]} : vector<8x256xf32> to vector<8x128xf32>
    %108 = arith.addf %106, %107 : vector<8x128xf32>
    %109 = vector.extract_strided_slice %105 {offsets = [0, 0], sizes = [8, 96], strides = [1, 1]} : vector<8x128xf32> to vector<8x96xf32>
    %cst_39 = arith.constant 5.000000e-01 : f32
    %110 = vector.broadcast %cst_39 : f32 to vector<8x96xf32>
    %111 = arith.mulf %110, %109 : vector<8x96xf32>
    %112 = math.tanh %111 : vector<8x96xf32>
    %cst_40 = arith.constant 1.000000e+00 : f32
    %113 = vector.broadcast %cst_40 : f32 to vector<8x96xf32>
    %114 = arith.addf %112, %113 : vector<8x96xf32>
    %cst_41 = arith.constant 5.000000e-01 : f32
    %115 = vector.broadcast %cst_41 : f32 to vector<8x96xf32>
    %116 = arith.mulf %115, %114 : vector<8x96xf32>
    %117 = vector.extract_strided_slice %116 {offsets = [0, 0], sizes = [8, 32], strides = [1, 1]} : vector<8x96xf32> to vector<8x32xf32>
    %118 = vector.extract_strided_slice %116 {offsets = [0, 32], sizes = [8, 32], strides = [1, 1]} : vector<8x96xf32> to vector<8x32xf32>
    %119 = vector.extract_strided_slice %116 {offsets = [0, 64], sizes = [8, 32], strides = [1, 1]} : vector<8x96xf32> to vector<8x32xf32>
    %120 = vector.extract_strided_slice %105 {offsets = [0, 96], sizes = [8, 32], strides = [1, 1]} : vector<8x128xf32> to vector<8x32xf32>
    %121 = math.tanh %120 : vector<8x32xf32>
    %122 = arith.mulf %118, %78 : vector<8x32xf32>
    %123 = arith.mulf %117, %121 : vector<8x32xf32>
    %124 = arith.addf %122, %123 : vector<8x32xf32>
    %125 = math.tanh %124 : vector<8x32xf32>
    %126 = arith.mulf %119, %125 : vector<8x32xf32>
    %127 = vector.extract_strided_slice %108 {offsets = [0, 0], sizes = [8, 96], strides = [1, 1]} : vector<8x128xf32> to vector<8x96xf32>
    %cst_42 = arith.constant 5.000000e-01 : f32
    %128 = vector.broadcast %cst_42 : f32 to vector<8x96xf32>
    %129 = arith.mulf %128, %127 : vector<8x96xf32>
    %130 = math.tanh %129 : vector<8x96xf32>
    %cst_43 = arith.constant 1.000000e+00 : f32
    %131 = vector.broadcast %cst_43 : f32 to vector<8x96xf32>
    %132 = arith.addf %130, %131 : vector<8x96xf32>
    %cst_44 = arith.constant 5.000000e-01 : f32
    %133 = vector.broadcast %cst_44 : f32 to vector<8x96xf32>
    %134 = arith.mulf %133, %132 : vector<8x96xf32>
    %135 = vector.extract_strided_slice %134 {offsets = [0, 0], sizes = [8, 32], strides = [1, 1]} : vector<8x96xf32> to vector<8x32xf32>
    %136 = vector.extract_strided_slice %134 {offsets = [0, 32], sizes = [8, 32], strides = [1, 1]} : vector<8x96xf32> to vector<8x32xf32>
    %137 = vector.extract_strided_slice %134 {offsets = [0, 64], sizes = [8, 32], strides = [1, 1]} : vector<8x96xf32> to vector<8x32xf32>
    %138 = vector.extract_strided_slice %108 {offsets = [0, 96], sizes = [8, 32], strides = [1, 1]} : vector<8x128xf32> to vector<8x32xf32>
    %139 = math.tanh %138 : vector<8x32xf32>
    %140 = arith.mulf %136, %96 : vector<8x32xf32>
    %141 = arith.mulf %135, %139 : vector<8x32xf32>
    %142 = arith.addf %140, %141 : vector<8x32xf32>
    %143 = math.tanh %142 : vector<8x32xf32>
    %144 = arith.mulf %137, %143 : vector<8x32xf32>
    %c16_45 = arith.constant 16 : index
    %c0_46 = arith.constant 0 : index
    %145 = vector.load %arg4[%c16_45, %c0_46] : memref<64x32xf32, #tpu.memory_space<vmem>>, vector<8x32xf32>
    tpu.vector_store %arg4[%c16_45, %c0_46], %126 {strides = array<i32>} : memref<64x32xf32, #tpu.memory_space<vmem>>, vector<8x32xf32>,
    %c40_47 = arith.constant 40 : index
    %c0_48 = arith.constant 0 : index
    %146 = vector.load %arg5[%c40_47, %c0_48] : memref<64x32xf32, #tpu.memory_space<vmem>>, vector<8x32xf32>
    tpu.vector_store %arg5[%c40_47, %c0_48], %144 {strides = array<i32>} : memref<64x32xf32, #tpu.memory_space<vmem>>, vector<8x32xf32>,
    %147 = tpu.concatenate %126, %144 in 1 : vector<8x32xf32>, vector<8x32xf32> -> vector<8x64xf32>
    %cst_49 = arith.constant dense<0.000000e+00> : vector<8x256xf32>
    %148 = tpu.matmul %147, %7, %cst_49 {dimension_numbers = #tpu.dot_dimension_numbers<[1], [0], [0], [1], [0, 0, 1, 1], [], []>} : vector<8x64xf32>, vector<64x256xf32>, vector<8x256xf32> -> vector<8x256xf32>
    %c24 = arith.constant 24 : index
    %c0_50 = arith.constant 0 : index
    %149 = vector.load %arg8[%c24, %c0_50] : memref<64x256xf32, #tpu.memory_space<vmem>>, vector<8x128xf32>
    %150 = vector.extract_strided_slice %148 {offsets = [0, 0], sizes = [8, 128], strides = [1, 1]} : vector<8x256xf32> to vector<8x128xf32>
    %151 = arith.addf %149, %150 : vector<8x128xf32>
    %c32 = arith.constant 32 : index
    %c128_51 = arith.constant 128 : index
    %152 = vector.load %arg8[%c32, %c128_51] : memref<64x256xf32, #tpu.memory_space<vmem>>, vector<8x128xf32>
    %153 = vector.extract_strided_slice %148 {offsets = [0, 128], sizes = [8, 128], strides = [1, 1]} : vector<8x256xf32> to vector<8x128xf32>
    %154 = arith.addf %152, %153 : vector<8x128xf32>
    %155 = vector.extract_strided_slice %151 {offsets = [0, 0], sizes = [8, 96], strides = [1, 1]} : vector<8x128xf32> to vector<8x96xf32>
    %cst_52 = arith.constant 5.000000e-01 : f32
    %156 = vector.broadcast %cst_52 : f32 to vector<8x96xf32>
    %157 = arith.mulf %156, %155 : vector<8x96xf32>
    %158 = math.tanh %157 : vector<8x96xf32>
    %cst_53 = arith.constant 1.000000e+00 : f32
    %159 = vector.broadcast %cst_53 : f32 to vector<8x96xf32>
    %160 = arith.addf %158, %159 : vector<8x96xf32>
    %cst_54 = arith.constant 5.000000e-01 : f32
    %161 = vector.broadcast %cst_54 : f32 to vector<8x96xf32>
    %162 = arith.mulf %161, %160 : vector<8x96xf32>
    %163 = vector.extract_strided_slice %162 {offsets = [0, 0], sizes = [8, 32], strides = [1, 1]} : vector<8x96xf32> to vector<8x32xf32>
    %164 = vector.extract_strided_slice %162 {offsets = [0, 32], sizes = [8, 32], strides = [1, 1]} : vector<8x96xf32> to vector<8x32xf32>
    %165 = vector.extract_strided_slice %162 {offsets = [0, 64], sizes = [8, 32], strides = [1, 1]} : vector<8x96xf32> to vector<8x32xf32>
    %166 = vector.extract_strided_slice %151 {offsets = [0, 96], sizes = [8, 32], strides = [1, 1]} : vector<8x128xf32> to vector<8x32xf32>
    %167 = math.tanh %166 : vector<8x32xf32>
    %168 = arith.mulf %164, %124 : vector<8x32xf32>
    %169 = arith.mulf %163, %167 : vector<8x32xf32>
    %170 = arith.addf %168, %169 : vector<8x32xf32>
    %171 = math.tanh %170 : vector<8x32xf32>
    %172 = arith.mulf %165, %171 : vector<8x32xf32>
    %173 = vector.extract_strided_slice %154 {offsets = [0, 0], sizes = [8, 96], strides = [1, 1]} : vector<8x128xf32> to vector<8x96xf32>
    %cst_55 = arith.constant 5.000000e-01 : f32
    %174 = vector.broadcast %cst_55 : f32 to vector<8x96xf32>
    %175 = arith.mulf %174, %173 : vector<8x96xf32>
    %176 = math.tanh %175 : vector<8x96xf32>
    %cst_56 = arith.constant 1.000000e+00 : f32
    %177 = vector.broadcast %cst_56 : f32 to vector<8x96xf32>
    %178 = arith.addf %176, %177 : vector<8x96xf32>
    %cst_57 = arith.constant 5.000000e-01 : f32
    %179 = vector.broadcast %cst_57 : f32 to vector<8x96xf32>
    %180 = arith.mulf %179, %178 : vector<8x96xf32>
    %181 = vector.extract_strided_slice %180 {offsets = [0, 0], sizes = [8, 32], strides = [1, 1]} : vector<8x96xf32> to vector<8x32xf32>
    %182 = vector.extract_strided_slice %180 {offsets = [0, 32], sizes = [8, 32], strides = [1, 1]} : vector<8x96xf32> to vector<8x32xf32>
    %183 = vector.extract_strided_slice %180 {offsets = [0, 64], sizes = [8, 32], strides = [1, 1]} : vector<8x96xf32> to vector<8x32xf32>
    %184 = vector.extract_strided_slice %154 {offsets = [0, 96], sizes = [8, 32], strides = [1, 1]} : vector<8x128xf32> to vector<8x32xf32>
    %185 = math.tanh %184 : vector<8x32xf32>
    %186 = arith.mulf %182, %142 : vector<8x32xf32>
    %187 = arith.mulf %181, %185 : vector<8x32xf32>
    %188 = arith.addf %186, %187 : vector<8x32xf32>
    %189 = math.tanh %188 : vector<8x32xf32>
    %190 = arith.mulf %183, %189 : vector<8x32xf32>
    %c24_58 = arith.constant 24 : index
    %c0_59 = arith.constant 0 : index
    %191 = vector.load %arg4[%c24_58, %c0_59] : memref<64x32xf32, #tpu.memory_space<vmem>>, vector<8x32xf32>
    tpu.vector_store %arg4[%c24_58, %c0_59], %172 {strides = array<i32>} : memref<64x32xf32, #tpu.memory_space<vmem>>, vector<8x32xf32>,
    %c32_60 = arith.constant 32 : index
    %c0_61 = arith.constant 0 : index
    %192 = vector.load %arg5[%c32_60, %c0_61] : memref<64x32xf32, #tpu.memory_space<vmem>>, vector<8x32xf32>
    tpu.vector_store %arg5[%c32_60, %c0_61], %190 {strides = array<i32>} : memref<64x32xf32, #tpu.memory_space<vmem>>, vector<8x32xf32>,
    %193 = tpu.concatenate %172, %190 in 1 : vector<8x32xf32>, vector<8x32xf32> -> vector<8x64xf32>
    %cst_62 = arith.constant dense<0.000000e+00> : vector<8x256xf32>
    %194 = tpu.matmul %193, %7, %cst_62 {dimension_numbers = #tpu.dot_dimension_numbers<[1], [0], [0], [1], [0, 0, 1, 1], [], []>} : vector<8x64xf32>, vector<64x256xf32>, vector<8x256xf32> -> vector<8x256xf32>
    %c32_63 = arith.constant 32 : index
    %c0_64 = arith.constant 0 : index
    %195 = vector.load %arg8[%c32_63, %c0_64] : memref<64x256xf32, #tpu.memory_space<vmem>>, vector<8x128xf32>
    %196 = vector.extract_strided_slice %194 {offsets = [0, 0], sizes = [8, 128], strides = [1, 1]} : vector<8x256xf32> to vector<8x128xf32>
    %197 = arith.addf %195, %196 : vector<8x128xf32>
    %c24_65 = arith.constant 24 : index
    %c128_66 = arith.constant 128 : index
    %198 = vector.load %arg8[%c24_65, %c128_66] : memref<64x256xf32, #tpu.memory_space<vmem>>, vector<8x128xf32>
    %199 = vector.extract_strided_slice %194 {offsets = [0, 128], sizes = [8, 128], strides = [1, 1]} : vector<8x256xf32> to vector<8x128xf32>
    %200 = arith.addf %198, %199 : vector<8x128xf32>
    %201 = vector.extract_strided_slice %197 {offsets = [0, 0], sizes = [8, 96], strides = [1, 1]} : vector<8x128xf32> to vector<8x96xf32>
    %cst_67 = arith.constant 5.000000e-01 : f32
    %202 = vector.broadcast %cst_67 : f32 to vector<8x96xf32>
    %203 = arith.mulf %202, %201 : vector<8x96xf32>
    %204 = math.tanh %203 : vector<8x96xf32>
    %cst_68 = arith.constant 1.000000e+00 : f32
    %205 = vector.broadcast %cst_68 : f32 to vector<8x96xf32>
    %206 = arith.addf %204, %205 : vector<8x96xf32>
    %cst_69 = arith.constant 5.000000e-01 : f32
    %207 = vector.broadcast %cst_69 : f32 to vector<8x96xf32>
    %208 = arith.mulf %207, %206 : vector<8x96xf32>
    %209 = vector.extract_strided_slice %208 {offsets = [0, 0], sizes = [8, 32], strides = [1, 1]} : vector<8x96xf32> to vector<8x32xf32>
    %210 = vector.extract_strided_slice %208 {offsets = [0, 32], sizes = [8, 32], strides = [1, 1]} : vector<8x96xf32> to vector<8x32xf32>
    %211 = vector.extract_strided_slice %208 {offsets = [0, 64], sizes = [8, 32], strides = [1, 1]} : vector<8x96xf32> to vector<8x32xf32>
    %212 = vector.extract_strided_slice %197 {offsets = [0, 96], sizes = [8, 32], strides = [1, 1]} : vector<8x128xf32> to vector<8x32xf32>
    %213 = math.tanh %212 : vector<8x32xf32>
    %214 = arith.mulf %210, %170 : vector<8x32xf32>
    %215 = arith.mulf %209, %213 : vector<8x32xf32>
    %216 = arith.addf %214, %215 : vector<8x32xf32>
    %217 = math.tanh %216 : vector<8x32xf32>
    %218 = arith.mulf %211, %217 : vector<8x32xf32>
    %219 = vector.extract_strided_slice %200 {offsets = [0, 0], sizes = [8, 96], strides = [1, 1]} : vector<8x128xf32> to vector<8x96xf32>
    %cst_70 = arith.constant 5.000000e-01 : f32
    %220 = vector.broadcast %cst_70 : f32 to vector<8x96xf32>
    %221 = arith.mulf %220, %219 : vector<8x96xf32>
    %222 = math.tanh %221 : vector<8x96xf32>
    %cst_71 = arith.constant 1.000000e+00 : f32
    %223 = vector.broadcast %cst_71 : f32 to vector<8x96xf32>
    %224 = arith.addf %222, %223 : vector<8x96xf32>
    %cst_72 = arith.constant 5.000000e-01 : f32
    %225 = vector.broadcast %cst_72 : f32 to vector<8x96xf32>
    %226 = arith.mulf %225, %224 : vector<8x96xf32>
    %227 = vector.extract_strided_slice %226 {offsets = [0, 0], sizes = [8, 32], strides = [1, 1]} : vector<8x96xf32> to vector<8x32xf32>
    %228 = vector.extract_strided_slice %226 {offsets = [0, 32], sizes = [8, 32], strides = [1, 1]} : vector<8x96xf32> to vector<8x32xf32>
    %229 = vector.extract_strided_slice %226 {offsets = [0, 64], sizes = [8, 32], strides = [1, 1]} : vector<8x96xf32> to vector<8x32xf32>
    %230 = vector.extract_strided_slice %200 {offsets = [0, 96], sizes = [8, 32], strides = [1, 1]} : vector<8x128xf32> to vector<8x32xf32>
    %231 = math.tanh %230 : vector<8x32xf32>
    %232 = arith.mulf %228, %188 : vector<8x32xf32>
    %233 = arith.mulf %227, %231 : vector<8x32xf32>
    %234 = arith.addf %232, %233 : vector<8x32xf32>
    %235 = math.tanh %234 : vector<8x32xf32>
    %236 = arith.mulf %229, %235 : vector<8x32xf32>
    %c32_73 = arith.constant 32 : index
    %c0_74 = arith.constant 0 : index
    %237 = vector.load %arg4[%c32_73, %c0_74] : memref<64x32xf32, #tpu.memory_space<vmem>>, vector<8x32xf32>
    tpu.vector_store %arg4[%c32_73, %c0_74], %218 {strides = array<i32>} : memref<64x32xf32, #tpu.memory_space<vmem>>, vector<8x32xf32>,
    %c24_75 = arith.constant 24 : index
    %c0_76 = arith.constant 0 : index
    %238 = vector.load %arg5[%c24_75, %c0_76] : memref<64x32xf32, #tpu.memory_space<vmem>>, vector<8x32xf32>
    tpu.vector_store %arg5[%c24_75, %c0_76], %236 {strides = array<i32>} : memref<64x32xf32, #tpu.memory_space<vmem>>, vector<8x32xf32>,
    %239 = tpu.concatenate %218, %236 in 1 : vector<8x32xf32>, vector<8x32xf32> -> vector<8x64xf32>
    %cst_77 = arith.constant dense<0.000000e+00> : vector<8x256xf32>
    %240 = tpu.matmul %239, %7, %cst_77 {dimension_numbers = #tpu.dot_dimension_numbers<[1], [0], [0], [1], [0, 0, 1, 1], [], []>} : vector<8x64xf32>, vector<64x256xf32>, vector<8x256xf32> -> vector<8x256xf32>
    %c40_78 = arith.constant 40 : index
    %c0_79 = arith.constant 0 : index
    %241 = vector.load %arg8[%c40_78, %c0_79] : memref<64x256xf32, #tpu.memory_space<vmem>>, vector<8x128xf32>
    %242 = vector.extract_strided_slice %240 {offsets = [0, 0], sizes = [8, 128], strides = [1, 1]} : vector<8x256xf32> to vector<8x128xf32>
    %243 = arith.addf %241, %242 : vector<8x128xf32>
    %c16_80 = arith.constant 16 : index
    %c128_81 = arith.constant 128 : index
    %244 = vector.load %arg8[%c16_80, %c128_81] : memref<64x256xf32, #tpu.memory_space<vmem>>, vector<8x128xf32>
    %245 = vector.extract_strided_slice %240 {offsets = [0, 128], sizes = [8, 128], strides = [1, 1]} : vector<8x256xf32> to vector<8x128xf32>
    %246 = arith.addf %244, %245 : vector<8x128xf32>
    %247 = vector.extract_strided_slice %243 {offsets = [0, 0], sizes = [8, 96], strides = [1, 1]} : vector<8x128xf32> to vector<8x96xf32>
    %cst_82 = arith.constant 5.000000e-01 : f32
    %248 = vector.broadcast %cst_82 : f32 to vector<8x96xf32>
    %249 = arith.mulf %248, %247 : vector<8x96xf32>
    %250 = math.tanh %249 : vector<8x96xf32>
    %cst_83 = arith.constant 1.000000e+00 : f32
    %251 = vector.broadcast %cst_83 : f32 to vector<8x96xf32>
    %252 = arith.addf %250, %251 : vector<8x96xf32>
    %cst_84 = arith.constant 5.000000e-01 : f32
    %253 = vector.broadcast %cst_84 : f32 to vector<8x96xf32>
    %254 = arith.mulf %253, %252 : vector<8x96xf32>
    %255 = vector.extract_strided_slice %254 {offsets = [0, 0], sizes = [8, 32], strides = [1, 1]} : vector<8x96xf32> to vector<8x32xf32>
    %256 = vector.extract_strided_slice %254 {offsets = [0, 32], sizes = [8, 32], strides = [1, 1]} : vector<8x96xf32> to vector<8x32xf32>
    %257 = vector.extract_strided_slice %254 {offsets = [0, 64], sizes = [8, 32], strides = [1, 1]} : vector<8x96xf32> to vector<8x32xf32>
    %258 = vector.extract_strided_slice %243 {offsets = [0, 96], sizes = [8, 32], strides = [1, 1]} : vector<8x128xf32> to vector<8x32xf32>
    %259 = math.tanh %258 : vector<8x32xf32>
    %260 = arith.mulf %256, %216 : vector<8x32xf32>
    %261 = arith.mulf %255, %259 : vector<8x32xf32>
    %262 = arith.addf %260, %261 : vector<8x32xf32>
    %263 = math.tanh %262 : vector<8x32xf32>
    %264 = arith.mulf %257, %263 : vector<8x32xf32>
    %265 = vector.extract_strided_slice %246 {offsets = [0, 0], sizes = [8, 96], strides = [1, 1]} : vector<8x128xf32> to vector<8x96xf32>
    %cst_85 = arith.constant 5.000000e-01 : f32
    %266 = vector.broadcast %cst_85 : f32 to vector<8x96xf32>
    %267 = arith.mulf %266, %265 : vector<8x96xf32>
    %268 = math.tanh %267 : vector<8x96xf32>
    %cst_86 = arith.constant 1.000000e+00 : f32
    %269 = vector.broadcast %cst_86 : f32 to vector<8x96xf32>
    %270 = arith.addf %268, %269 : vector<8x96xf32>
    %cst_87 = arith.constant 5.000000e-01 : f32
    %271 = vector.broadcast %cst_87 : f32 to vector<8x96xf32>
    %272 = arith.mulf %271, %270 : vector<8x96xf32>
    %273 = vector.extract_strided_slice %272 {offsets = [0, 0], sizes = [8, 32], strides = [1, 1]} : vector<8x96xf32> to vector<8x32xf32>
    %274 = vector.extract_strided_slice %272 {offsets = [0, 32], sizes = [8, 32], strides = [1, 1]} : vector<8x96xf32> to vector<8x32xf32>
    %275 = vector.extract_strided_slice %272 {offsets = [0, 64], sizes = [8, 32], strides = [1, 1]} : vector<8x96xf32> to vector<8x32xf32>
    %276 = vector.extract_strided_slice %246 {offsets = [0, 96], sizes = [8, 32], strides = [1, 1]} : vector<8x128xf32> to vector<8x32xf32>
    %277 = math.tanh %276 : vector<8x32xf32>
    %278 = arith.mulf %274, %234 : vector<8x32xf32>
    %279 = arith.mulf %273, %277 : vector<8x32xf32>
    %280 = arith.addf %278, %279 : vector<8x32xf32>
    %281 = math.tanh %280 : vector<8x32xf32>
    %282 = arith.mulf %275, %281 : vector<8x32xf32>
    %c40_88 = arith.constant 40 : index
    %c0_89 = arith.constant 0 : index
    %283 = vector.load %arg4[%c40_88, %c0_89] : memref<64x32xf32, #tpu.memory_space<vmem>>, vector<8x32xf32>
    tpu.vector_store %arg4[%c40_88, %c0_89], %264 {strides = array<i32>} : memref<64x32xf32, #tpu.memory_space<vmem>>, vector<8x32xf32>,
    %c16_90 = arith.constant 16 : index
    %c0_91 = arith.constant 0 : index
    %284 = vector.load %arg5[%c16_90, %c0_91] : memref<64x32xf32, #tpu.memory_space<vmem>>, vector<8x32xf32>
    tpu.vector_store %arg5[%c16_90, %c0_91], %282 {strides = array<i32>} : memref<64x32xf32, #tpu.memory_space<vmem>>, vector<8x32xf32>,
    %285 = tpu.concatenate %264, %282 in 1 : vector<8x32xf32>, vector<8x32xf32> -> vector<8x64xf32>
    %cst_92 = arith.constant dense<0.000000e+00> : vector<8x256xf32>
    %286 = tpu.matmul %285, %7, %cst_92 {dimension_numbers = #tpu.dot_dimension_numbers<[1], [0], [0], [1], [0, 0, 1, 1], [], []>} : vector<8x64xf32>, vector<64x256xf32>, vector<8x256xf32> -> vector<8x256xf32>
    %c48_93 = arith.constant 48 : index
    %c0_94 = arith.constant 0 : index
    %287 = vector.load %arg8[%c48_93, %c0_94] : memref<64x256xf32, #tpu.memory_space<vmem>>, vector<8x128xf32>
    %288 = vector.extract_strided_slice %286 {offsets = [0, 0], sizes = [8, 128], strides = [1, 1]} : vector<8x256xf32> to vector<8x128xf32>
    %289 = arith.addf %287, %288 : vector<8x128xf32>
    %c8_95 = arith.constant 8 : index
    %c128_96 = arith.constant 128 : index
    %290 = vector.load %arg8[%c8_95, %c128_96] : memref<64x256xf32, #tpu.memory_space<vmem>>, vector<8x128xf32>
    %291 = vector.extract_strided_slice %286 {offsets = [0, 128], sizes = [8, 128], strides = [1, 1]} : vector<8x256xf32> to vector<8x128xf32>
    %292 = arith.addf %290, %291 : vector<8x128xf32>
    %293 = vector.extract_strided_slice %289 {offsets = [0, 0], sizes = [8, 96], strides = [1, 1]} : vector<8x128xf32> to vector<8x96xf32>
    %cst_97 = arith.constant 5.000000e-01 : f32
    %294 = vector.broadcast %cst_97 : f32 to vector<8x96xf32>
    %295 = arith.mulf %294, %293 : vector<8x96xf32>
    %296 = math.tanh %295 : vector<8x96xf32>
    %cst_98 = arith.constant 1.000000e+00 : f32
    %297 = vector.broadcast %cst_98 : f32 to vector<8x96xf32>
    %298 = arith.addf %296, %297 : vector<8x96xf32>
    %cst_99 = arith.constant 5.000000e-01 : f32
    %299 = vector.broadcast %cst_99 : f32 to vector<8x96xf32>
    %300 = arith.mulf %299, %298 : vector<8x96xf32>
    %301 = vector.extract_strided_slice %300 {offsets = [0, 0], sizes = [8, 32], strides = [1, 1]} : vector<8x96xf32> to vector<8x32xf32>
    %302 = vector.extract_strided_slice %300 {offsets = [0, 32], sizes = [8, 32], strides = [1, 1]} : vector<8x96xf32> to vector<8x32xf32>
    %303 = vector.extract_strided_slice %300 {offsets = [0, 64], sizes = [8, 32], strides = [1, 1]} : vector<8x96xf32> to vector<8x32xf32>
    %304 = vector.extract_strided_slice %289 {offsets = [0, 96], sizes = [8, 32], strides = [1, 1]} : vector<8x128xf32> to vector<8x32xf32>
    %305 = math.tanh %304 : vector<8x32xf32>
    %306 = arith.mulf %302, %262 : vector<8x32xf32>
    %307 = arith.mulf %301, %305 : vector<8x32xf32>
    %308 = arith.addf %306, %307 : vector<8x32xf32>
    %309 = math.tanh %308 : vector<8x32xf32>
    %310 = arith.mulf %303, %309 : vector<8x32xf32>
    %311 = vector.extract_strided_slice %292 {offsets = [0, 0], sizes = [8, 96], strides = [1, 1]} : vector<8x128xf32> to vector<8x96xf32>
    %cst_100 = arith.constant 5.000000e-01 : f32
    %312 = vector.broadcast %cst_100 : f32 to vector<8x96xf32>
    %313 = arith.mulf %312, %311 : vector<8x96xf32>
    %314 = math.tanh %313 : vector<8x96xf32>
    %cst_101 = arith.constant 1.000000e+00 : f32
    %315 = vector.broadcast %cst_101 : f32 to vector<8x96xf32>
    %316 = arith.addf %314, %315 : vector<8x96xf32>
    %cst_102 = arith.constant 5.000000e-01 : f32
    %317 = vector.broadcast %cst_102 : f32 to vector<8x96xf32>
    %318 = arith.mulf %317, %316 : vector<8x96xf32>
    %319 = vector.extract_strided_slice %318 {offsets = [0, 0], sizes = [8, 32], strides = [1, 1]} : vector<8x96xf32> to vector<8x32xf32>
    %320 = vector.extract_strided_slice %318 {offsets = [0, 32], sizes = [8, 32], strides = [1, 1]} : vector<8x96xf32> to vector<8x32xf32>
    %321 = vector.extract_strided_slice %318 {offsets = [0, 64], sizes = [8, 32], strides = [1, 1]} : vector<8x96xf32> to vector<8x32xf32>
    %322 = vector.extract_strided_slice %292 {offsets = [0, 96], sizes = [8, 32], strides = [1, 1]} : vector<8x128xf32> to vector<8x32xf32>
    %323 = math.tanh %322 : vector<8x32xf32>
    %324 = arith.mulf %320, %280 : vector<8x32xf32>
    %325 = arith.mulf %319, %323 : vector<8x32xf32>
    %326 = arith.addf %324, %325 : vector<8x32xf32>
    %327 = math.tanh %326 : vector<8x32xf32>
    %328 = arith.mulf %321, %327 : vector<8x32xf32>
    %c48_103 = arith.constant 48 : index
    %c0_104 = arith.constant 0 : index
    %329 = vector.load %arg4[%c48_103, %c0_104] : memref<64x32xf32, #tpu.memory_space<vmem>>, vector<8x32xf32>
    tpu.vector_store %arg4[%c48_103, %c0_104], %310 {strides = array<i32>} : memref<64x32xf32, #tpu.memory_space<vmem>>, vector<8x32xf32>,
    %c8_105 = arith.constant 8 : index
    %c0_106 = arith.constant 0 : index
    %330 = vector.load %arg5[%c8_105, %c0_106] : memref<64x32xf32, #tpu.memory_space<vmem>>, vector<8x32xf32>
    tpu.vector_store %arg5[%c8_105, %c0_106], %328 {strides = array<i32>} : memref<64x32xf32, #tpu.memory_space<vmem>>, vector<8x32xf32>,
    %331 = tpu.concatenate %310, %328 in 1 : vector<8x32xf32>, vector<8x32xf32> -> vector<8x64xf32>
    %cst_107 = arith.constant dense<0.000000e+00> : vector<8x256xf32>
    %332 = tpu.matmul %331, %7, %cst_107 {dimension_numbers = #tpu.dot_dimension_numbers<[1], [0], [0], [1], [0, 0, 1, 1], [], []>} : vector<8x64xf32>, vector<64x256xf32>, vector<8x256xf32> -> vector<8x256xf32>
    %c56_108 = arith.constant 56 : index
    %c0_109 = arith.constant 0 : index
    %333 = vector.load %arg8[%c56_108, %c0_109] : memref<64x256xf32, #tpu.memory_space<vmem>>, vector<8x128xf32>
    %334 = vector.extract_strided_slice %332 {offsets = [0, 0], sizes = [8, 128], strides = [1, 1]} : vector<8x256xf32> to vector<8x128xf32>
    %335 = arith.addf %333, %334 : vector<8x128xf32>
    %c0_110 = arith.constant 0 : index
    %c128_111 = arith.constant 128 : index
    %336 = vector.load %arg8[%c0_110, %c128_111] : memref<64x256xf32, #tpu.memory_space<vmem>>, vector<8x128xf32>
    %337 = vector.extract_strided_slice %332 {offsets = [0, 128], sizes = [8, 128], strides = [1, 1]} : vector<8x256xf32> to vector<8x128xf32>
    %338 = arith.addf %336, %337 : vector<8x128xf32>
    %339 = vector.extract_strided_slice %335 {offsets = [0, 0], sizes = [8, 96], strides = [1, 1]} : vector<8x128xf32> to vector<8x96xf32>
    %cst_112 = arith.constant 5.000000e-01 : f32
    %340 = vector.broadcast %cst_112 : f32 to vector<8x96xf32>
    %341 = arith.mulf %340, %339 : vector<8x96xf32>
    %342 = math.tanh %341 : vector<8x96xf32>
    %cst_113 = arith.constant 1.000000e+00 : f32
    %343 = vector.broadcast %cst_113 : f32 to vector<8x96xf32>
    %344 = arith.addf %342, %343 : vector<8x96xf32>
    %cst_114 = arith.constant 5.000000e-01 : f32
    %345 = vector.broadcast %cst_114 : f32 to vector<8x96xf32>
    %346 = arith.mulf %345, %344 : vector<8x96xf32>
    %347 = vector.extract_strided_slice %346 {offsets = [0, 0], sizes = [8, 32], strides = [1, 1]} : vector<8x96xf32> to vector<8x32xf32>
    %348 = vector.extract_strided_slice %346 {offsets = [0, 32], sizes = [8, 32], strides = [1, 1]} : vector<8x96xf32> to vector<8x32xf32>
    %349 = vector.extract_strided_slice %346 {offsets = [0, 64], sizes = [8, 32], strides = [1, 1]} : vector<8x96xf32> to vector<8x32xf32>
    %350 = vector.extract_strided_slice %335 {offsets = [0, 96], sizes = [8, 32], strides = [1, 1]} : vector<8x128xf32> to vector<8x32xf32>
    %351 = math.tanh %350 : vector<8x32xf32>
    %352 = arith.mulf %348, %308 : vector<8x32xf32>
    %353 = arith.mulf %347, %351 : vector<8x32xf32>
    %354 = arith.addf %352, %353 : vector<8x32xf32>
    %355 = math.tanh %354 : vector<8x32xf32>
    %356 = arith.mulf %349, %355 : vector<8x32xf32>
    %357 = vector.extract_strided_slice %338 {offsets = [0, 0], sizes = [8, 96], strides = [1, 1]} : vector<8x128xf32> to vector<8x96xf32>
    %cst_115 = arith.constant 5.000000e-01 : f32
    %358 = vector.broadcast %cst_115 : f32 to vector<8x96xf32>
    %359 = arith.mulf %358, %357 : vector<8x96xf32>
    %360 = math.tanh %359 : vector<8x96xf32>
    %cst_116 = arith.constant 1.000000e+00 : f32
    %361 = vector.broadcast %cst_116 : f32 to vector<8x96xf32>
    %362 = arith.addf %360, %361 : vector<8x96xf32>
    %cst_117 = arith.constant 5.000000e-01 : f32
    %363 = vector.broadcast %cst_117 : f32 to vector<8x96xf32>
    %364 = arith.mulf %363, %362 : vector<8x96xf32>
    %365 = vector.extract_strided_slice %364 {offsets = [0, 0], sizes = [8, 32], strides = [1, 1]} : vector<8x96xf32> to vector<8x32xf32>
    %366 = vector.extract_strided_slice %364 {offsets = [0, 32], sizes = [8, 32], strides = [1, 1]} : vector<8x96xf32> to vector<8x32xf32>
    %367 = vector.extract_strided_slice %364 {offsets = [0, 64], sizes = [8, 32], strides = [1, 1]} : vector<8x96xf32> to vector<8x32xf32>
    %368 = vector.extract_strided_slice %338 {offsets = [0, 96], sizes = [8, 32], strides = [1, 1]} : vector<8x128xf32> to vector<8x32xf32>
    %369 = math.tanh %368 : vector<8x32xf32>
    %370 = arith.mulf %366, %326 : vector<8x32xf32>
    %371 = arith.mulf %365, %369 : vector<8x32xf32>
    %372 = arith.addf %370, %371 : vector<8x32xf32>
    %373 = math.tanh %372 : vector<8x32xf32>
    %374 = arith.mulf %367, %373 : vector<8x32xf32>
    %c56_118 = arith.constant 56 : index
    %c0_119 = arith.constant 0 : index
    %375 = vector.load %arg4[%c56_118, %c0_119] : memref<64x32xf32, #tpu.memory_space<vmem>>, vector<8x32xf32>
    tpu.vector_store %arg4[%c56_118, %c0_119], %356 {strides = array<i32>} : memref<64x32xf32, #tpu.memory_space<vmem>>, vector<8x32xf32>,
    %c0_120 = arith.constant 0 : index
    %c0_121 = arith.constant 0 : index
    %376 = vector.load %arg5[%c0_120, %c0_121] : memref<64x32xf32, #tpu.memory_space<vmem>>, vector<8x32xf32>
    tpu.vector_store %arg5[%c0_120, %c0_121], %374 {strides = array<i32>} : memref<64x32xf32, #tpu.memory_space<vmem>>, vector<8x32xf32>,
    %c0_122 = arith.constant 0 : index
    %c0_123 = arith.constant 0 : index
    %377 = vector.load %arg6[%c0_122, %c0_123] : memref<8x64xf32, #tpu.memory_space<vmem>>, vector<8x32xf32>
    tpu.vector_store %arg6[%c0_122, %c0_123], %356 {strides = array<i32>} : memref<8x64xf32, #tpu.memory_space<vmem>>, vector<8x32xf32>,
    %c0_124 = arith.constant 0 : index
    %c32_125 = arith.constant 32 : index
    %378 = vector.load %arg6[%c0_124, %c32_125] : memref<8x64xf32, #tpu.memory_space<vmem>>, vector<8x32xf32>
    tpu.vector_store %arg6[%c0_124, %c32_125], %374 {strides = array<i32>} : memref<8x64xf32, #tpu.memory_space<vmem>>, vector<8x32xf32>,
    %c0_126 = arith.constant 0 : index
    %c0_127 = arith.constant 0 : index
    %379 = vector.load %arg7[%c0_126, %c0_127] : memref<8x64xf32, #tpu.memory_space<vmem>>, vector<8x32xf32>
    tpu.vector_store %arg7[%c0_126, %c0_127], %354 {strides = array<i32>} : memref<8x64xf32, #tpu.memory_space<vmem>>, vector<8x32xf32>,
    %c0_128 = arith.constant 0 : index
    %c32_129 = arith.constant 32 : index
    %380 = vector.load %arg7[%c0_128, %c32_129] : memref<8x64xf32, #tpu.memory_space<vmem>>, vector<8x32xf32>
    tpu.vector_store %arg7[%c0_128, %c32_129], %372 {strides = array<i32>} : memref<8x64xf32, #tpu.memory_space<vmem>>, vector<8x32xf32>,
    return
  }
}

</mosaic_0001>

<llo_original>
// kernel: tpu_custom_call.1
$region0: #{tpu_custom_call.1}
  #allocation0 [shape = 'u32[]', space=smem, size = 0x4, offset = 0x4, fixed_abs, tag = 'smem constant byte address 0x4 - core index']
  #allocation1 [shape = 'u32[72,128]{1,0:T(1,128)}', space=vmem, size = 0x9000, scoped, tag = 'internal scratch']
  #allocation2 [shape = 'f32[64,256]{1,0:T(8,128)}', space=vmem, size = 0x10000, scoped, tag = 'scratch operand']
  %s0 = inlined_call_operand.vmem [shape: f32[64,32], index: 0, kind: input, shape index: {}]
  %s1 = inlined_call_operand.vmem [shape: f32[32,256], index: 1, kind: input, shape index: {}]
  %s2 = inlined_call_operand.vmem [shape: f32[1,256], index: 2, kind: input, shape index: {}]
  %s3 = inlined_call_operand.hbm [shape: f32[64,256], index: 3, kind: input, shape index: {}]
  %s4 = inlined_call_operand.vmem [shape: f32[64,32], index: 4, kind: output, shape index: {0}]
  %s5 = inlined_call_operand.vmem [shape: f32[64,32], index: 5, kind: output, shape index: {1}]
  %s6 = inlined_call_operand.hbm [shape: f32[8,64], index: 6, kind: output, shape index: {2}]
  %s7 = inlined_call_operand.hbm [shape: f32[8,64], index: 7, kind: output, shape index: {3}]
  %8 = xla_tuple %s4, %s5, %s6, %s7
  %s9 = sld [smem:[#allocation0]]
  $region54: #{tpu_custom_call.1} parent=0
    _
  %s11 = ssub.s32 1, %s9
  %s12 = scalar_select 0, %s11, %s9
  $region1: #{tpu_custom_call.1} parent=0
    #allocation3 [shape = 'u8[65536]{0}', space=vmem, size = 0x10000, scoped, tag = 'input window, operand 3, single buffered']
    #allocation4 [shape = 's32[1]{0}', space=sflag, size = 0x4, scoped, tag = 'scoped memory for tpu_custom_call.1']
    #allocation5 [shape = 's32[1]{0}', space=sflag, size = 0x4, scoped, tag = 'scoped memory for tpu_custom_call.1']
    #allocation6 [shape = 'u8[4096]{0}', space=vmem, size = 0x1000, scoped, tag = 'output window, operand 2, single buffered']
    #allocation7 [shape = 'u8[4096]{0}', space=vmem, size = 0x1000, scoped, tag = 'output window, operand 3, single buffered']
    #allocation8 [shape = 's32[1]{0}', space=sflag, size = 0x4, scoped, tag = 'scoped memory for tpu_custom_call.1']
    %13 = vsyncpa [#allocation4], 0
    %14 = vsyncpa [#allocation5], 0
    %15 = vsyncpa [#allocation8], 0
    // Predicated region
    $region2: #{tpu_custom_call.1} parent=1 // pred_check
      _
    $region3: #{tpu_custom_call.1} parent=1 // pred_check_branch
      %17 = sbr.rel (0) target = $region5
    $region4: #{tpu_custom_call.1} parent=1 // pred_region
      _
    $region5: #{tpu_custom_call.1} parent=1 // pred_fallthru
      _
    // Predicated region
    $region6: #{tpu_custom_call.1} parent=1 // pred_check
      _
    $region7: #{tpu_custom_call.1} parent=1 // pred_check_branch
      %19 = sbr.rel (0) target = $region9
    $region8: #{tpu_custom_call.1} parent=1 // pred_region
      _
    $region9: #{tpu_custom_call.1} parent=1 // pred_fallthru
      _
    // Predicated region
    $region10: #{tpu_custom_call.1} parent=1 // pred_check
      _
    $region11: #{tpu_custom_call.1} parent=1 // pred_check_branch
      %21 = sbr.rel (0) target = $region13
    $region12: #{tpu_custom_call.1} parent=1 // pred_region
      _
    $region13: #{tpu_custom_call.1} parent=1 // pred_fallthru
      _
    // Predicated region
    $region14: #{tpu_custom_call.1} parent=1 // pred_check
      _
    $region15: #{tpu_custom_call.1} parent=1 // pred_check_branch
      %23 = sbr.rel (0) target = $region17
    $region16: #{tpu_custom_call.1} parent=1 // pred_region
      %25 = vsyncadd [#allocation4], 0
      %s26 = sshll.u32 %s3, 4
      %s27 = int_to_ptr.hbm [resolvable:$true] %s26
      %s28 = sshll.u32 [#allocation3], 4
      %s29 = int_to_ptr.vmem [resolvable:$true] %s28
      %34 = dma.hbm_to_vmem [thread:$0]  %s27, 2048, %s29, [#allocation4], 256, 256, 16
    $region17: #{tpu_custom_call.1} parent=1 // pred_fallthru
      _
    // Predicated region
    $region18: #{tpu_custom_call.1} parent=1 // pred_check
      _
    $region19: #{tpu_custom_call.1} parent=1 // pred_check_branch
      %36 = sbr.rel (0) target = $region21
    $region20: #{tpu_custom_call.1} parent=1 // pred_region
      %38 = dma.done [#allocation4], 2048
    $region21: #{tpu_custom_call.1} parent=1 // pred_fallthru
      _
    %v39 = vld [vmem:[%s0] sm:$0xff]
    %v40 = vld [vmem:[%s0 + $0x8] sm:$0xff]
    %v41 = vld [vmem:[%s0 + $0x10] sm:$0xff]
    %v42 = vld [vmem:[%s0 + $0x18] sm:$0xff]
    %v43 = vld [vmem:[%s0 + $0x20] sm:$0xff]
    %v44 = vld [vmem:[%s0 + $0x28] sm:$0xff]
    %v45 = vld [vmem:[%s0 + $0x30] sm:$0xff]
    %v46 = vld [vmem:[%s0 + $0x38] sm:$0xff]
    %v47 = vld [vmem:[%s1] sm:$0xff]
    %v48 = vld [vmem:[%s1 + $0x8] sm:$0xff]
    %v49 = vld [vmem:[%s1 + $0x10] sm:$0xff]
    %v50 = vld [vmem:[%s1 + $0x18] sm:$0xff]
    %v51 = vld [vmem:[%s1 + $0x20] sm:$0xff]
    %v52 = vld [vmem:[%s1 + $0x28] sm:$0xff]
    %v53 = vld [vmem:[%s1 + $0x30] sm:$0xff]
    %v54 = vld [vmem:[%s1 + $0x38] sm:$0xff]
    %v55 = vld [vmem:[%s2] sm:$0x3]
    %v57 = vperm.slane %v55, 0
    %v58 = vperm.slane %v55, 1
    %vm61 = vcmask 261120
    %v63 = vsel %vm61, %v39, 0
    %v66 = vsel %vm61, %v40, 0
    %v69 = vsel %vm61, %v41, 0
    %v72 = vsel %vm61, %v42, 0
    %v75 = vsel %vm61, %v43, 0
    %v78 = vsel %vm61, %v44, 0
    %v81 = vsel %vm61, %v45, 0
    %v84 = vsel %vm61, %v46, 0
    %86 = vmatpush.msra.mxu0 0.0
    %87 = vmatpush.msra.mxu0 0.0
    %88 = vmatpush.msra.mxu0 0.0
    %89 = vmatpush.msra.mxu0 0.0
    %90 = vmatpush.msra.mxu0 0.0
    %91 = vmatpush.msra.mxu0 0.0
    %92 = vmatpush.msra.mxu0 0.0
    %93 = vmatpush.msra.mxu0 0.0
    %94 = vmatpush.msra.mxu0 0.0
    %95 = vmatpush.msra.mxu0 0.0
    %96 = vmatpush.msra.mxu0 0.0
    %97 = vmatpush.msra.mxu0 0.0
    %98 = vmatpush.msra.mxu0 %v53
    %99 = vmatpush.msra.mxu0 %v51
    %100 = vmatpush.msra.mxu0 %v49
    %101 = vmatpush.msra.mxu0 %v47
    %102 = vmatmul.f32.gmra.mxu0 %v63
    %v103 = vpop.f32.mrf.mxu0
    %v104 = vadd.f32 %v57, %v103
    %105 = vmatmul.f32.gmra.mxu0 %v66
    %v106 = vpop.f32.mrf.mxu0
    %v107 = vadd.f32 %v57, %v106
    %108 = vmatmul.f32.gmra.mxu0 %v69
    %v109 = vpop.f32.mrf.mxu0
    %v110 = vadd.f32 %v57, %v109
    %111 = vmatmul.f32.gmra.mxu0 %v72
    %v112 = vpop.f32.mrf.mxu0
    %v113 = vadd.f32 %v57, %v112
    %114 = vmatmul.f32.gmra.mxu0 %v75
    %v115 = vpop.f32.mrf.mxu0
    %v116 = vadd.f32 %v57, %v115
    %117 = vmatmul.f32.gmra.mxu0 %v78
    %v118 = vpop.f32.mrf.mxu0
    %v119 = vadd.f32 %v57, %v118
    %120 = vmatmul.f32.gmra.mxu0 %v81
    %v121 = vpop.f32.mrf.mxu0
    %v122 = vadd.f32 %v57, %v121
    %123 = vmatmul.f32.gmra.mxu0 %v84
    %v124 = vpop.f32.mrf.mxu0
    %v125 = vadd.f32 %v57, %v124
    %126 = vdwg.mxu0
    %127 = vmatpush.msra.mxu0 0.0
    %128 = vmatpush.msra.mxu0 0.0
    %129 = vmatpush.msra.mxu0 0.0
    %130 = vmatpush.msra.mxu0 0.0
    %131 = vmatpush.msra.mxu0 0.0
    %132 = vmatpush.msra.mxu0 0.0
    %133 = vmatpush.msra.mxu0 0.0
    %134 = vmatpush.msra.mxu0 0.0
    %135 = vmatpush.msra.mxu0 0.0
    %136 = vmatpush.msra.mxu0 0.0
    %137 = vmatpush.msra.mxu0 0.0
    %138 = vmatpush.msra.mxu0 0.0
    %139 = vmatpush.msra.mxu0 %v54
    %140 = vmatpush.msra.mxu0 %v52
    %141 = vmatpush.msra.mxu0 %v50
    %142 = vmatpush.msra.mxu0 %v48
    %143 = vmatmul.f32.gmra.mxu0 %v63
    %v144 = vpop.f32.mrf.mxu0
    %v145 = vadd.f32 %v58, %v144
    %146 = vmatmul.f32.gmra.mxu0 %v66
    %v147 = vpop.f32.mrf.mxu0
    %v148 = vadd.f32 %v58, %v147
    %149 = vmatmul.f32.gmra.mxu0 %v69
    %v150 = vpop.f32.mrf.mxu0
    %v151 = vadd.f32 %v58, %v150
    %152 = vmatmul.f32.gmra.mxu0 %v72
    %v153 = vpop.f32.mrf.mxu0
    %v154 = vadd.f32 %v58, %v153
    %155 = vmatmul.f32.gmra.mxu0 %v75
    %v156 = vpop.f32.mrf.mxu0
    %v157 = vadd.f32 %v58, %v156
    %158 = vmatmul.f32.gmra.mxu0 %v78
    %v159 = vpop.f32.mrf.mxu0
    %v160 = vadd.f32 %v58, %v159
    %161 = vmatmul.f32.gmra.mxu0 %v81
    %v162 = vpop.f32.mrf.mxu0
    %v163 = vadd.f32 %v58, %v162
    %164 = vmatmul.f32.gmra.mxu0 %v84
    %v165 = vpop.f32.mrf.mxu0
    %v166 = vadd.f32 %v58, %v165
    %167 = vdwg.mxu0
    %168 = vst [vmem:[#allocation2] sm:$0xff] %v104
    %169 = vst [vmem:[#allocation2 + $0x8] sm:$0xff] %v145
    %170 = vst [vmem:[#allocation2 + $0x10] sm:$0xff] %v107
    %171 = vst [vmem:[#allocation2 + $0x18] sm:$0xff] %v148
    %172 = vst [vmem:[#allocation2 + $0x20] sm:$0xff] %v110
    %173 = vst [vmem:[#allocation2 + $0x28] sm:$0xff] %v151
    %174 = vst [vmem:[#allocation2 + $0x30] sm:$0xff] %v113
    %175 = vst [vmem:[#allocation2 + $0x38] sm:$0xff] %v154
    %176 = vst [vmem:[#allocation2 + $0x40] sm:$0xff] %v116
    %177 = vst [vmem:[#allocation2 + $0x48] sm:$0xff] %v157
    %178 = vst [vmem:[#allocation2 + $0x50] sm:$0xff] %v119
    %179 = vst [vmem:[#allocation2 + $0x58] sm:$0xff] %v160
    %180 = vst [vmem:[#allocation2 + $0x60] sm:$0xff] %v122
    %181 = vst [vmem:[#allocation2 + $0x68] sm:$0xff] %v163
    %182 = vst [vmem:[#allocation2 + $0x70] sm:$0xff] %v125
    %183 = vst [vmem:[#allocation2 + $0x78] sm:$0xff] %v166
    %v184 = vld [vmem:[#allocation3] sm:$0xff]
    %v185 = vld [vmem:[#allocation3 + $0x8] sm:$0xff]
    %v186 = vld [vmem:[#allocation3 + $0x10] sm:$0xff]
    %v187 = vld [vmem:[#allocation3 + $0x18] sm:$0xff]
    %v188 = vld [vmem:[#allocation3 + $0x20] sm:$0xff]
    %v189 = vld [vmem:[#allocation3 + $0x28] sm:$0xff]
    %v190 = vld [vmem:[#allocation3 + $0x30] sm:$0xff]
    %v191 = vld [vmem:[#allocation3 + $0x38] sm:$0xff]
    %v192 = vld [vmem:[#allocation3 + $0x40] sm:$0xff]
    %v193 = vld [vmem:[#allocation3 + $0x48] sm:$0xff]
    %v194 = vld [vmem:[#allocation3 + $0x50] sm:$0xff]
    %v195 = vld [vmem:[#allocation3 + $0x58] sm:$0xff]
    %v196 = vld [vmem:[#allocation3 + $0x60] sm:$0xff]
    %v197 = vld [vmem:[#allocation3 + $0x68] sm:$0xff]
    %v198 = vld [vmem:[#allocation3 + $0x70] sm:$0xff]
    %v199 = vld [vmem:[#allocation3 + $0x78] sm:$0xff]
    %vm200 = vcmask 523264
    %v202 = vsel %vm200, 0.0, 0
    %204 = vmatpush.msra.mxu0 0.0
    %205 = vmatpush.msra.mxu0 0.0
    %206 = vmatpush.msra.mxu0 0.0
    %207 = vmatpush.msra.mxu0 0.0
    %208 = vmatpush.msra.mxu0 0.0
    %209 = vmatpush.msra.mxu0 0.0
    %210 = vmatpush.msra.mxu0 0.0
    %211 = vmatpush.msra.mxu0 0.0
    %212 = vmatpush.msra.mxu0 %v198
    %213 = vmatpush.msra.mxu0 %v196
    %214 = vmatpush.msra.mxu0 %v194
    %215 = vmatpush.msra.mxu0 %v192
    %216 = vmatpush.msra.mxu0 %v190
    %217 = vmatpush.msra.mxu0 %v188
    %218 = vmatpush.msra.mxu0 %v186
    %219 = vmatpush.msra.mxu0 %v184
    %220 = vmatmul.f32.gmra.mxu0 %v202
    %v221 = vpop.f32.mrf.mxu0
    %v222 = vadd.f32 0.0, %v221
    %223 = vdwg.mxu0
    %224 = vmatpush.msra.mxu0 0.0
    %225 = vmatpush.msra.mxu0 0.0
    %226 = vmatpush.msra.mxu0 0.0
    %227 = vmatpush.msra.mxu0 0.0
    %228 = vmatpush.msra.mxu0 0.0
    %229 = vmatpush.msra.mxu0 0.0
    %230 = vmatpush.msra.mxu0 0.0
    %231 = vmatpush.msra.mxu0 0.0
    %232 = vmatpush.msra.mxu0 %v199
    %233 = vmatpush.msra.mxu0 %v197
    %234 = vmatpush.msra.mxu0 %v195
    %235 = vmatpush.msra.mxu0 %v193
    %236 = vmatpush.msra.mxu0 %v191
    %237 = vmatpush.msra.mxu0 %v189
    %238 = vmatpush.msra.mxu0 %v187
    %239 = vmatpush.msra.mxu0 %v185
    %240 = vmatmul.f32.gmra.mxu0 %v202
    %v241 = vpop.f32.mrf.mxu0
    %v242 = vadd.f32 0.0, %v241
    %243 = vdwg.mxu0
    %v244 = vld [vmem:[#allocation2] sm:$0xff]
    %v245 = vadd.f32 %v244, %v222
    %v246 = vld [vmem:[#allocation2 + $0x78] sm:$0xff]
    %v247 = vadd.f32 %v246, %v242
    %v248 = vmul.f32 %v245, 0.5
    %v249 = vtanh.pop %v248
    %v250 = vadd.f32 %v249, 1.0
    %v251 = vmul.f32 %v250, 0.5
    %v252 = vtanh.pop %v245
    %v253 = vmul.f32 %v251, 0.0
    %255 = vrot.lane.b32.xlu0 %v252, 32
    %v256 = vpop.permute.xlu0 %255
    %v258 = vmul.f32 %v251, %v256
    %260 = vrot.lane.b32.xlu0 %v258, 32
    %v261 = vpop.permute.xlu0 %260
    %v263 = vadd.f32 %v253, %v261
    %v264 = vtanh.pop %v263
    %266 = vrot.lane.b32.xlu0 %v264, 32
    %v267 = vpop.permute.xlu0 %266
    %v269 = vmul.f32 %v251, %v267
    %v270 = vmul.f32 %v247, 0.5
    %v271 = vtanh.pop %v270
    %v272 = vadd.f32 %v271, 1.0
    %v273 = vmul.f32 %v272, 0.5
    %v274 = vtanh.pop %v247
    %v275 = vmul.f32 %v273, 0.0
    %277 = vrot.lane.b32.xlu0 %v274, 32
    %v278 = vpop.permute.xlu0 %277
    %v280 = vmul.f32 %v273, %v278
    %282 = vrot.lane.b32.xlu0 %v280, 32
    %v283 = vpop.permute.xlu0 %282
    %v285 = vadd.f32 %v275, %v283
    %v286 = vtanh.pop %v285
    %288 = vrot.lane.b32.xlu0 %v286, 32
    %v289 = vpop.permute.xlu0 %288
    %v291 = vmul.f32 %v273, %v289
    %293 = vrot.lane.b32.xlu0 %v269, 64
    %v294 = vpop.permute.xlu0 %293
    %296 = vst.msk [vmem:[%s4] sm:$0xff] %vm61, %v294
    %298 = vrot.lane.b32.xlu0 %v291, 64
    %v299 = vpop.permute.xlu0 %298
    %301 = vst.msk [vmem:[%s5 + $0x38] sm:$0xff] %vm61, %v299
    %302 = vrot.lane.b32.xlu0 %v291, 96
    %v303 = vpop.permute.xlu0 %302
    %v305 = vsel %vm61, %v294, %v303
    %v307 = vsel %vm200, %v305, 0
    %309 = vmatpush.msra.mxu0 0.0
    %310 = vmatpush.msra.mxu0 0.0
    %311 = vmatpush.msra.mxu0 0.0
    %312 = vmatpush.msra.mxu0 0.0
    %313 = vmatpush.msra.mxu0 0.0
    %314 = vmatpush.msra.mxu0 0.0
    %315 = vmatpush.msra.mxu0 0.0
    %316 = vmatpush.msra.mxu0 0.0
    %317 = vmatpush.msra.mxu0 %v198
    %318 = vmatpush.msra.mxu0 %v196
    %319 = vmatpush.msra.mxu0 %v194
    %320 = vmatpush.msra.mxu0 %v192
    %321 = vmatpush.msra.mxu0 %v190
    %322 = vmatpush.msra.mxu0 %v188
    %323 = vmatpush.msra.mxu0 %v186
    %324 = vmatpush.msra.mxu0 %v184
    %325 = vmatmul.f32.gmra.mxu0 %v307
    %v326 = vpop.f32.mrf.mxu0
    %v327 = vadd.f32 0.0, %v326
    %328 = vdwg.mxu0
    %329 = vmatpush.msra.mxu0 0.0
    %330 = vmatpush.msra.mxu0 0.0
    %331 = vmatpush.msra.mxu0 0.0
    %332 = vmatpush.msra.mxu0 0.0
    %333 = vmatpush.msra.mxu0 0.0
    %334 = vmatpush.msra.mxu0 0.0
    %335 = vmatpush.msra.mxu0 0.0
    %336 = vmatpush.msra.mxu0 0.0
    %337 = vmatpush.msra.mxu0 %v199
    %338 = vmatpush.msra.mxu0 %v197
    %339 = vmatpush.msra.mxu0 %v195
    %340 = vmatpush.msra.mxu0 %v193
    %341 = vmatpush.msra.mxu0 %v191
    %342 = vmatpush.msra.mxu0 %v189
    %343 = vmatpush.msra.mxu0 %v187
    %344 = vmatpush.msra.mxu0 %v185
    %345 = vmatmul.f32.gmra.mxu0 %v307
    %v346 = vpop.f32.mrf.mxu0
    %v347 = vadd.f32 0.0, %v346
    %348 = vdwg.mxu0
    %v349 = vld [vmem:[#allocation2 + $0x10] sm:$0xff]
    %v350 = vadd.f32 %v349, %v327
    %v351 = vld [vmem:[#allocation2 + $0x68] sm:$0xff]
    %v352 = vadd.f32 %v351, %v347
    %v353 = vmul.f32 %v350, 0.5
    %v354 = vtanh.pop %v353
    %v355 = vadd.f32 %v354, 1.0
    %v356 = vmul.f32 %v355, 0.5
    %v357 = vtanh.pop %v350
    %v358 = vmul.f32 %v356, %v263
    %360 = vrot.lane.b32.xlu0 %v357, 32
    %v361 = vpop.permute.xlu0 %360
    %v363 = vmul.f32 %v356, %v361
    %365 = vrot.lane.b32.xlu0 %v363, 32
    %v366 = vpop.permute.xlu0 %365
    %v368 = vadd.f32 %v358, %v366
    %v369 = vtanh.pop %v368
    %371 = vrot.lane.b32.xlu0 %v369, 32
    %v372 = vpop.permute.xlu0 %371
    %v374 = vmul.f32 %v356, %v372
    %v375 = vmul.f32 %v352, 0.5
    %v376 = vtanh.pop %v375
    %v377 = vadd.f32 %v376, 1.0
    %v378 = vmul.f32 %v377, 0.5
    %v379 = vtanh.pop %v352
    %v380 = vmul.f32 %v378, %v285
    %382 = vrot.lane.b32.xlu0 %v379, 32
    %v383 = vpop.permute.xlu0 %382
    %v385 = vmul.f32 %v378, %v383
    %387 = vrot.lane.b32.xlu0 %v385, 32
    %v388 = vpop.permute.xlu0 %387
    %v390 = vadd.f32 %v380, %v388
    %v391 = vtanh.pop %v390
    %393 = vrot.lane.b32.xlu0 %v391, 32
    %v394 = vpop.permute.xlu0 %393
    %v396 = vmul.f32 %v378, %v394
    %398 = vrot.lane.b32.xlu0 %v374, 64
    %v399 = vpop.permute.xlu0 %398
    %401 = vst.msk [vmem:[%s4 + $0x8] sm:$0xff] %vm61, %v399
    %403 = vrot.lane.b32.xlu0 %v396, 64
    %v404 = vpop.permute.xlu0 %403
    %406 = vst.msk [vmem:[%s5 + $0x30] sm:$0xff] %vm61, %v404
    %407 = vrot.lane.b32.xlu0 %v396, 96
    %v408 = vpop.permute.xlu0 %407
    %v410 = vsel %vm61, %v399, %v408
    %v412 = vsel %vm200, %v410, 0
    %414 = vmatpush.msra.mxu0 0.0
    %415 = vmatpush.msra.mxu0 0.0
    %416 = vmatpush.msra.mxu0 0.0
    %417 = vmatpush.msra.mxu0 0.0
    %418 = vmatpush.msra.mxu0 0.0
    %419 = vmatpush.msra.mxu0 0.0
    %420 = vmatpush.msra.mxu0 0.0
    %421 = vmatpush.msra.mxu0 0.0
    %422 = vmatpush.msra.mxu0 %v198
    %423 = vmatpush.msra.mxu0 %v196
    %424 = vmatpush.msra.mxu0 %v194
    %425 = vmatpush.msra.mxu0 %v192
    %426 = vmatpush.msra.mxu0 %v190
    %427 = vmatpush.msra.mxu0 %v188
    %428 = vmatpush.msra.mxu0 %v186
    %429 = vmatpush.msra.mxu0 %v184
    %430 = vmatmul.f32.gmra.mxu0 %v412
    %v431 = vpop.f32.mrf.mxu0
    %v432 = vadd.f32 0.0, %v431
    %433 = vdwg.mxu0
    %434 = vmatpush.msra.mxu0 0.0
    %435 = vmatpush.msra.mxu0 0.0
    %436 = vmatpush.msra.mxu0 0.0
    %437 = vmatpush.msra.mxu0 0.0
    %438 = vmatpush.msra.mxu0 0.0
    %439 = vmatpush.msra.mxu0 0.0
    %440 = vmatpush.msra.mxu0 0.0
    %441 = vmatpush.msra.mxu0 0.0
    %442 = vmatpush.msra.mxu0 %v199
    %443 = vmatpush.msra.mxu0 %v197
    %444 = vmatpush.msra.mxu0 %v195
    %445 = vmatpush.msra.mxu0 %v193
    %446 = vmatpush.msra.mxu0 %v191
    %447 = vmatpush.msra.mxu0 %v189
    %448 = vmatpush.msra.mxu0 %v187
    %449 = vmatpush.msra.mxu0 %v185
    %450 = vmatmul.f32.gmra.mxu0 %v412
    %v451 = vpop.f32.mrf.mxu0
    %v452 = vadd.f32 0.0, %v451
    %453 = vdwg.mxu0
    %v454 = vld [vmem:[#allocation2 + $0x20] sm:$0xff]
    %v455 = vadd.f32 %v454, %v432
    %v456 = vld [vmem:[#allocation2 + $0x58] sm:$0xff]
    %v457 = vadd.f32 %v456, %v452
    %v458 = vmul.f32 %v455, 0.5
    %v459 = vtanh.pop %v458
    %v460 = vadd.f32 %v459, 1.0
    %v461 = vmul.f32 %v460, 0.5
    %v462 = vtanh.pop %v455
    %v463 = vmul.f32 %v461, %v368
    %465 = vrot.lane.b32.xlu0 %v462, 32
    %v466 = vpop.permute.xlu0 %465
    %v468 = vmul.f32 %v461, %v466
    %470 = vrot.lane.b32.xlu0 %v468, 32
    %v471 = vpop.permute.xlu0 %470
    %v473 = vadd.f32 %v463, %v471
    %v474 = vtanh.pop %v473
    %476 = vrot.lane.b32.xlu0 %v474, 32
    %v477 = vpop.permute.xlu0 %476
    %v479 = vmul.f32 %v461, %v477
    %v480 = vmul.f32 %v457, 0.5
    %v481 = vtanh.pop %v480
    %v482 = vadd.f32 %v481, 1.0
    %v483 = vmul.f32 %v482, 0.5
    %v484 = vtanh.pop %v457
    %v485 = vmul.f32 %v483, %v390
    %487 = vrot.lane.b32.xlu0 %v484, 32
    %v488 = vpop.permute.xlu0 %487
    %v490 = vmul.f32 %v483, %v488
    %492 = vrot.lane.b32.xlu0 %v490, 32
    %v493 = vpop.permute.xlu0 %492
    %v495 = vadd.f32 %v485, %v493
    %v496 = vtanh.pop %v495
    %498 = vrot.lane.b32.xlu0 %v496, 32
    %v499 = vpop.permute.xlu0 %498
    %v501 = vmul.f32 %v483, %v499
    %503 = vrot.lane.b32.xlu0 %v479, 64
    %v504 = vpop.permute.xlu0 %503
    %506 = vst.msk [vmem:[%s4 + $0x10] sm:$0xff] %vm61, %v504
    %508 = vrot.lane.b32.xlu0 %v501, 64
    %v509 = vpop.permute.xlu0 %508
    %511 = vst.msk [vmem:[%s5 + $0x28] sm:$0xff] %vm61, %v509
    %512 = vrot.lane.b32.xlu0 %v501, 96
    %v513 = vpop.permute.xlu0 %512
    %v515 = vsel %vm61, %v504, %v513
    %v517 = vsel %vm200, %v515, 0
    %519 = vmatpush.msra.mxu0 0.0
    %520 = vmatpush.msra.mxu0 0.0
    %521 = vmatpush.msra.mxu0 0.0
    %522 = vmatpush.msra.mxu0 0.0
    %523 = vmatpush.msra.mxu0 0.0
    %524 = vmatpush.msra.mxu0 0.0
    %525 = vmatpush.msra.mxu0 0.0
    %526 = vmatpush.msra.mxu0 0.0
    %527 = vmatpush.msra.mxu0 %v198
    %528 = vmatpush.msra.mxu0 %v196
    %529 = vmatpush.msra.mxu0 %v194
    %530 = vmatpush.msra.mxu0 %v192
    %531 = vmatpush.msra.mxu0 %v190
    %532 = vmatpush.msra.mxu0 %v188
    %533 = vmatpush.msra.mxu0 %v186
    %534 = vmatpush.msra.mxu0 %v184
    %535 = vmatmul.f32.gmra.mxu0 %v517
    %v536 = vpop.f32.mrf.mxu0
    %v537 = vadd.f32 0.0, %v536
    %538 = vdwg.mxu0
    %539 = vmatpush.msra.mxu0 0.0
    %540 = vmatpush.msra.mxu0 0.0
    %541 = vmatpush.msra.mxu0 0.0
    %542 = vmatpush.msra.mxu0 0.0
    %543 = vmatpush.msra.mxu0 0.0
    %544 = vmatpush.msra.mxu0 0.0
    %545 = vmatpush.msra.mxu0 0.0
    %546 = vmatpush.msra.mxu0 0.0
    %547 = vmatpush.msra.mxu0 %v199
    %548 = vmatpush.msra.mxu0 %v197
    %549 = vmatpush.msra.mxu0 %v195
    %550 = vmatpush.msra.mxu0 %v193
    %551 = vmatpush.msra.mxu0 %v191
    %552 = vmatpush.msra.mxu0 %v189
    %553 = vmatpush.msra.mxu0 %v187
    %554 = vmatpush.msra.mxu0 %v185
    %555 = vmatmul.f32.gmra.mxu0 %v517
    %v556 = vpop.f32.mrf.mxu0
    %v557 = vadd.f32 0.0, %v556
    %558 = vdwg.mxu0
    %v559 = vld [vmem:[#allocation2 + $0x30] sm:$0xff]
    %v560 = vadd.f32 %v559, %v537
    %v561 = vld [vmem:[#allocation2 + $0x48] sm:$0xff]
    %v562 = vadd.f32 %v561, %v557
    %v563 = vmul.f32 %v560, 0.5
    %v564 = vtanh.pop %v563
    %v565 = vadd.f32 %v564, 1.0
    %v566 = vmul.f32 %v565, 0.5
    %v567 = vtanh.pop %v560
    %v568 = vmul.f32 %v566, %v473
    %570 = vrot.lane.b32.xlu0 %v567, 32
    %v571 = vpop.permute.xlu0 %570
    %v573 = vmul.f32 %v566, %v571
    %575 = vrot.lane.b32.xlu0 %v573, 32
    %v576 = vpop.permute.xlu0 %575
    %v578 = vadd.f32 %v568, %v576
    %v579 = vtanh.pop %v578
    %581 = vrot.lane.b32.xlu0 %v579, 32
    %v582 = vpop.permute.xlu0 %581
    %v584 = vmul.f32 %v566, %v582
    %v585 = vmul.f32 %v562, 0.5
    %v586 = vtanh.pop %v585
    %v587 = vadd.f32 %v586, 1.0
    %v588 = vmul.f32 %v587, 0.5
    %v589 = vtanh.pop %v562
    %v590 = vmul.f32 %v588, %v495
    %592 = vrot.lane.b32.xlu0 %v589, 32
    %v593 = vpop.permute.xlu0 %592
    %v595 = vmul.f32 %v588, %v593
    %597 = vrot.lane.b32.xlu0 %v595, 32
    %v598 = vpop.permute.xlu0 %597
    %v600 = vadd.f32 %v590, %v598
    %v601 = vtanh.pop %v600
    %603 = vrot.lane.b32.xlu0 %v601, 32
    %v604 = vpop.permute.xlu0 %603
    %v606 = vmul.f32 %v588, %v604
    %608 = vrot.lane.b32.xlu0 %v584, 64
    %v609 = vpop.permute.xlu0 %608
    %611 = vst.msk [vmem:[%s4 + $0x18] sm:$0xff] %vm61, %v609
    %613 = vrot.lane.b32.xlu0 %v606, 64
    %v614 = vpop.permute.xlu0 %613
    %616 = vst.msk [vmem:[%s5 + $0x20] sm:$0xff] %vm61, %v614
    %617 = vrot.lane.b32.xlu0 %v606, 96
    %v618 = vpop.permute.xlu0 %617
    %v620 = vsel %vm61, %v609, %v618
    %v622 = vsel %vm200, %v620, 0
    %624 = vmatpush.msra.mxu0 0.0
    %625 = vmatpush.msra.mxu0 0.0
    %626 = vmatpush.msra.mxu0 0.0
    %627 = vmatpush.msra.mxu0 0.0
    %628 = vmatpush.msra.mxu0 0.0
    %629 = vmatpush.msra.mxu0 0.0
    %630 = vmatpush.msra.mxu0 0.0
    %631 = vmatpush.msra.mxu0 0.0
    %632 = vmatpush.msra.mxu0 %v198
    %633 = vmatpush.msra.mxu0 %v196
    %634 = vmatpush.msra.mxu0 %v194
    %635 = vmatpush.msra.mxu0 %v192
    %636 = vmatpush.msra.mxu0 %v190
    %637 = vmatpush.msra.mxu0 %v188
    %638 = vmatpush.msra.mxu0 %v186
    %639 = vmatpush.msra.mxu0 %v184
    %640 = vmatmul.f32.gmra.mxu0 %v622
    %v641 = vpop.f32.mrf.mxu0
    %v642 = vadd.f32 0.0, %v641
    %643 = vdwg.mxu0
    %644 = vmatpush.msra.mxu0 0.0
    %645 = vmatpush.msra.mxu0 0.0
    %646 = vmatpush.msra.mxu0 0.0
    %647 = vmatpush.msra.mxu0 0.0
    %648 = vmatpush.msra.mxu0 0.0
    %649 = vmatpush.msra.mxu0 0.0
    %650 = vmatpush.msra.mxu0 0.0
    %651 = vmatpush.msra.mxu0 0.0
    %652 = vmatpush.msra.mxu0 %v199
    %653 = vmatpush.msra.mxu0 %v197
    %654 = vmatpush.msra.mxu0 %v195
    %655 = vmatpush.msra.mxu0 %v193
    %656 = vmatpush.msra.mxu0 %v191
    %657 = vmatpush.msra.mxu0 %v189
    %658 = vmatpush.msra.mxu0 %v187
    %659 = vmatpush.msra.mxu0 %v185
    %660 = vmatmul.f32.gmra.mxu0 %v622
    %v661 = vpop.f32.mrf.mxu0
    %v662 = vadd.f32 0.0, %v661
    %663 = vdwg.mxu0
    %v664 = vld [vmem:[#allocation2 + $0x40] sm:$0xff]
    %v665 = vadd.f32 %v664, %v642
    %v666 = vld [vmem:[#allocation2 + $0x38] sm:$0xff]
    %v667 = vadd.f32 %v666, %v662
    %v668 = vmul.f32 %v665, 0.5
    %v669 = vtanh.pop %v668
    %v670 = vadd.f32 %v669, 1.0
    %v671 = vmul.f32 %v670, 0.5
    %v672 = vtanh.pop %v665
    %v673 = vmul.f32 %v671, %v578
    %675 = vrot.lane.b32.xlu0 %v672, 32
    %v676 = vpop.permute.xlu0 %675
    %v678 = vmul.f32 %v671, %v676
    %680 = vrot.lane.b32.xlu0 %v678, 32
    %v681 = vpop.permute.xlu0 %680
    %v683 = vadd.f32 %v673, %v681
    %v684 = vtanh.pop %v683
    %686 = vrot.lane.b32.xlu0 %v684, 32
    %v687 = vpop.permute.xlu0 %686
    %v689 = vmul.f32 %v671, %v687
    %v690 = vmul.f32 %v667, 0.5
    %v691 = vtanh.pop %v690
    %v692 = vadd.f32 %v691, 1.0
    %v693 = vmul.f32 %v692, 0.5
    %v694 = vtanh.pop %v667
    %v695 = vmul.f32 %v693, %v600
    %697 = vrot.lane.b32.xlu0 %v694, 32
    %v698 = vpop.permute.xlu0 %697
    %v700 = vmul.f32 %v693, %v698
    %702 = vrot.lane.b32.xlu0 %v700, 32
    %v703 = vpop.permute.xlu0 %702
    %v705 = vadd.f32 %v695, %v703
    %v706 = vtanh.pop %v705
    %708 = vrot.lane.b32.xlu0 %v706, 32
    %v709 = vpop.permute.xlu0 %708
    %v711 = vmul.f32 %v693, %v709
    %713 = vrot.lane.b32.xlu0 %v689, 64
    %v714 = vpop.permute.xlu0 %713
    %716 = vst.msk [vmem:[%s4 + $0x20] sm:$0xff] %vm61, %v714
    %718 = vrot.lane.b32.xlu0 %v711, 64
    %v719 = vpop.permute.xlu0 %718
    %721 = vst.msk [vmem:[%s5 + $0x18] sm:$0xff] %vm61, %v719
    %722 = vrot.lane.b32.xlu0 %v711, 96
    %v723 = vpop.permute.xlu0 %722
    %v725 = vsel %vm61, %v714, %v723
    %v727 = vsel %vm200, %v725, 0
    %729 = vmatpush.msra.mxu0 0.0
    %730 = vmatpush.msra.mxu0 0.0
    %731 = vmatpush.msra.mxu0 0.0
    %732 = vmatpush.msra.mxu0 0.0
    %733 = vmatpush.msra.mxu0 0.0
    %734 = vmatpush.msra.mxu0 0.0
    %735 = vmatpush.msra.mxu0 0.0
    %736 = vmatpush.msra.mxu0 0.0
    %737 = vmatpush.msra.mxu0 %v198
    %738 = vmatpush.msra.mxu0 %v196
    %739 = vmatpush.msra.mxu0 %v194
    %740 = vmatpush.msra.mxu0 %v192
    %741 = vmatpush.msra.mxu0 %v190
    %742 = vmatpush.msra.mxu0 %v188
    %743 = vmatpush.msra.mxu0 %v186
    %744 = vmatpush.msra.mxu0 %v184
    %745 = vmatmul.f32.gmra.mxu0 %v727
    %v746 = vpop.f32.mrf.mxu0
    %v747 = vadd.f32 0.0, %v746
    %748 = vdwg.mxu0
    %749 = vmatpush.msra.mxu0 0.0
    %750 = vmatpush.msra.mxu0 0.0
    %751 = vmatpush.msra.mxu0 0.0
    %752 = vmatpush.msra.mxu0 0.0
    %753 = vmatpush.msra.mxu0 0.0
    %754 = vmatpush.msra.mxu0 0.0
    %755 = vmatpush.msra.mxu0 0.0
    %756 = vmatpush.msra.mxu0 0.0
    %757 = vmatpush.msra.mxu0 %v199
    %758 = vmatpush.msra.mxu0 %v197
    %759 = vmatpush.msra.mxu0 %v195
    %760 = vmatpush.msra.mxu0 %v193
    %761 = vmatpush.msra.mxu0 %v191
    %762 = vmatpush.msra.mxu0 %v189
    %763 = vmatpush.msra.mxu0 %v187
    %764 = vmatpush.msra.mxu0 %v185
    %765 = vmatmul.f32.gmra.mxu0 %v727
    %v766 = vpop.f32.mrf.mxu0
    %v767 = vadd.f32 0.0, %v766
    %768 = vdwg.mxu0
    %v769 = vld [vmem:[#allocation2 + $0x50] sm:$0xff]
    %v770 = vadd.f32 %v769, %v747
    %v771 = vld [vmem:[#allocation2 + $0x28] sm:$0xff]
    %v772 = vadd.f32 %v771, %v767
    %v773 = vmul.f32 %v770, 0.5
    %v774 = vtanh.pop %v773
    %v775 = vadd.f32 %v774, 1.0
    %v776 = vmul.f32 %v775, 0.5
    %v777 = vtanh.pop %v770
    %v778 = vmul.f32 %v776, %v683
    %780 = vrot.lane.b32.xlu0 %v777, 32
    %v781 = vpop.permute.xlu0 %780
    %v783 = vmul.f32 %v776, %v781
    %785 = vrot.lane.b32.xlu0 %v783, 32
    %v786 = vpop.permute.xlu0 %785
    %v788 = vadd.f32 %v778, %v786
    %v789 = vtanh.pop %v788
    %791 = vrot.lane.b32.xlu0 %v789, 32
    %v792 = vpop.permute.xlu0 %791
    %v794 = vmul.f32 %v776, %v792
    %v795 = vmul.f32 %v772, 0.5
    %v796 = vtanh.pop %v795
    %v797 = vadd.f32 %v796, 1.0
    %v798 = vmul.f32 %v797, 0.5
    %v799 = vtanh.pop %v772
    %v800 = vmul.f32 %v798, %v705
    %802 = vrot.lane.b32.xlu0 %v799, 32
    %v803 = vpop.permute.xlu0 %802
    %v805 = vmul.f32 %v798, %v803
    %807 = vrot.lane.b32.xlu0 %v805, 32
    %v808 = vpop.permute.xlu0 %807
    %v810 = vadd.f32 %v800, %v808
    %v811 = vtanh.pop %v810
    %813 = vrot.lane.b32.xlu0 %v811, 32
    %v814 = vpop.permute.xlu0 %813
    %v816 = vmul.f32 %v798, %v814
    %818 = vrot.lane.b32.xlu0 %v794, 64
    %v819 = vpop.permute.xlu0 %818
    %821 = vst.msk [vmem:[%s4 + $0x28] sm:$0xff] %vm61, %v819
    %823 = vrot.lane.b32.xlu0 %v816, 64
    %v824 = vpop.permute.xlu0 %823
    %826 = vst.msk [vmem:[%s5 + $0x10] sm:$0xff] %vm61, %v824
    %827 = vrot.lane.b32.xlu0 %v816, 96
    %v828 = vpop.permute.xlu0 %827
    %v830 = vsel %vm61, %v819, %v828
    %v832 = vsel %vm200, %v830, 0
    %834 = vmatpush.msra.mxu0 0.0
    %835 = vmatpush.msra.mxu0 0.0
    %836 = vmatpush.msra.mxu0 0.0
    %837 = vmatpush.msra.mxu0 0.0
    %838 = vmatpush.msra.mxu0 0.0
    %839 = vmatpush.msra.mxu0 0.0
    %840 = vmatpush.msra.mxu0 0.0
    %841 = vmatpush.msra.mxu0 0.0
    %842 = vmatpush.msra.mxu0 %v198
    %843 = vmatpush.msra.mxu0 %v196
    %844 = vmatpush.msra.mxu0 %v194
    %845 = vmatpush.msra.mxu0 %v192
    %846 = vmatpush.msra.mxu0 %v190
    %847 = vmatpush.msra.mxu0 %v188
    %848 = vmatpush.msra.mxu0 %v186
    %849 = vmatpush.msra.mxu0 %v184
    %850 = vmatmul.f32.gmra.mxu0 %v832
    %v851 = vpop.f32.mrf.mxu0
    %v852 = vadd.f32 0.0, %v851
    %853 = vdwg.mxu0
    %854 = vmatpush.msra.mxu0 0.0
    %855 = vmatpush.msra.mxu0 0.0
    %856 = vmatpush.msra.mxu0 0.0
    %857 = vmatpush.msra.mxu0 0.0
    %858 = vmatpush.msra.mxu0 0.0
    %859 = vmatpush.msra.mxu0 0.0
    %860 = vmatpush.msra.mxu0 0.0
    %861 = vmatpush.msra.mxu0 0.0
    %862 = vmatpush.msra.mxu0 %v199
    %863 = vmatpush.msra.mxu0 %v197
    %864 = vmatpush.msra.mxu0 %v195
    %865 = vmatpush.msra.mxu0 %v193
    %866 = vmatpush.msra.mxu0 %v191
    %867 = vmatpush.msra.mxu0 %v189
    %868 = vmatpush.msra.mxu0 %v187
    %869 = vmatpush.msra.mxu0 %v185
    %870 = vmatmul.f32.gmra.mxu0 %v832
    %v871 = vpop.f32.mrf.mxu0
    %v872 = vadd.f32 0.0, %v871
    %873 = vdwg.mxu0
    %v874 = vld [vmem:[#allocation2 + $0x60] sm:$0xff]
    %v875 = vadd.f32 %v874, %v852
    %v876 = vld [vmem:[#allocation2 + $0x18] sm:$0xff]
    %v877 = vadd.f32 %v876, %v872
    %v878 = vmul.f32 %v875, 0.5
    %v879 = vtanh.pop %v878
    %v880 = vadd.f32 %v879, 1.0
    %v881 = vmul.f32 %v880, 0.5
    %v882 = vtanh.pop %v875
    %v883 = vmul.f32 %v881, %v788
    %885 = vrot.lane.b32.xlu0 %v882, 32
    %v886 = vpop.permute.xlu0 %885
    %v888 = vmul.f32 %v881, %v886
    %890 = vrot.lane.b32.xlu0 %v888, 32
    %v891 = vpop.permute.xlu0 %890
    %v893 = vadd.f32 %v883, %v891
    %v894 = vtanh.pop %v893
    %896 = vrot.lane.b32.xlu0 %v894, 32
    %v897 = vpop.permute.xlu0 %896
    %v899 = vmul.f32 %v881, %v897
    %v900 = vmul.f32 %v877, 0.5
    %v901 = vtanh.pop %v900
    %v902 = vadd.f32 %v901, 1.0
    %v903 = vmul.f32 %v902, 0.5
    %v904 = vtanh.pop %v877
    %v905 = vmul.f32 %v903, %v810
    %907 = vrot.lane.b32.xlu0 %v904, 32
    %v908 = vpop.permute.xlu0 %907
    %v910 = vmul.f32 %v903, %v908
    %912 = vrot.lane.b32.xlu0 %v910, 32
    %v913 = vpop.permute.xlu0 %912
    %v915 = vadd.f32 %v905, %v913
    %v916 = vtanh.pop %v915
    %918 = vrot.lane.b32.xlu0 %v916, 32
    %v919 = vpop.permute.xlu0 %918
    %v921 = vmul.f32 %v903, %v919
    %923 = vrot.lane.b32.xlu0 %v899, 64
    %v924 = vpop.permute.xlu0 %923
    %926 = vst.msk [vmem:[%s4 + $0x30] sm:$0xff] %vm61, %v924
    %928 = vrot.lane.b32.xlu0 %v921, 64
    %v929 = vpop.permute.xlu0 %928
    %931 = vst.msk [vmem:[%s5 + $0x8] sm:$0xff] %vm61, %v929
    %932 = vrot.lane.b32.xlu0 %v921, 96
    %v933 = vpop.permute.xlu0 %932
    %v935 = vsel %vm61, %v924, %v933
    %v937 = vsel %vm200, %v935, 0
    %939 = vmatpush.msra.mxu0 0.0
    %940 = vmatpush.msra.mxu0 0.0
    %941 = vmatpush.msra.mxu0 0.0
    %942 = vmatpush.msra.mxu0 0.0
    %943 = vmatpush.msra.mxu0 0.0
    %944 = vmatpush.msra.mxu0 0.0
    %945 = vmatpush.msra.mxu0 0.0
    %946 = vmatpush.msra.mxu0 0.0
    %947 = vmatpush.msra.mxu0 %v198
    %948 = vmatpush.msra.mxu0 %v196
    %949 = vmatpush.msra.mxu0 %v194
    %950 = vmatpush.msra.mxu0 %v192
    %951 = vmatpush.msra.mxu0 %v190
    %952 = vmatpush.msra.mxu0 %v188
    %953 = vmatpush.msra.mxu0 %v186
    %954 = vmatpush.msra.mxu0 %v184
    %955 = vmatmul.f32.gmra.mxu0 %v937
    %v956 = vpop.f32.mrf.mxu0
    %v957 = vadd.f32 0.0, %v956
    %958 = vdwg.mxu0
    %959 = vmatpush.msra.mxu0 0.0
    %960 = vmatpush.msra.mxu0 0.0
    %961 = vmatpush.msra.mxu0 0.0
    %962 = vmatpush.msra.mxu0 0.0
    %963 = vmatpush.msra.mxu0 0.0
    %964 = vmatpush.msra.mxu0 0.0
    %965 = vmatpush.msra.mxu0 0.0
    %966 = vmatpush.msra.mxu0 0.0
    %967 = vmatpush.msra.mxu0 %v199
    %968 = vmatpush.msra.mxu0 %v197
    %969 = vmatpush.msra.mxu0 %v195
    %970 = vmatpush.msra.mxu0 %v193
    %971 = vmatpush.msra.mxu0 %v191
    %972 = vmatpush.msra.mxu0 %v189
    %973 = vmatpush.msra.mxu0 %v187
    %974 = vmatpush.msra.mxu0 %v185
    %975 = vmatmul.f32.gmra.mxu0 %v937
    %v976 = vpop.f32.mrf.mxu0
    %v977 = vadd.f32 0.0, %v976
    %978 = vdwg.mxu0
    %v979 = vld [vmem:[#allocation2 + $0x70] sm:$0xff]
    %v980 = vadd.f32 %v979, %v957
    %v981 = vld [vmem:[#allocation2 + $0x8] sm:$0xff]
    %v982 = vadd.f32 %v981, %v977
    %v983 = vmul.f32 %v980, 0.5
    %v984 = vtanh.pop %v983
    %v985 = vadd.f32 %v984, 1.0
    %v986 = vmul.f32 %v985, 0.5
    %v987 = vtanh.pop %v980
    %v988 = vmul.f32 %v986, %v893
    %990 = vrot.lane.b32.xlu0 %v987, 32
    %v991 = vpop.permute.xlu0 %990
    %v993 = vmul.f32 %v986, %v991
    %995 = vrot.lane.b32.xlu0 %v993, 32
    %v996 = vpop.permute.xlu0 %995
    %v998 = vadd.f32 %v988, %v996
    %v999 = vtanh.pop %v998
    %1001 = vrot.lane.b32.xlu0 %v999, 32
    %v1002 = vpop.permute.xlu0 %1001
    %v1004 = vmul.f32 %v986, %v1002
    %v1005 = vmul.f32 %v982, 0.5
    %v1006 = vtanh.pop %v1005
    %v1007 = vadd.f32 %v1006, 1.0
    %v1008 = vmul.f32 %v1007, 0.5
    %v1009 = vtanh.pop %v982
    %v1010 = vmul.f32 %v1008, %v915
    %1012 = vrot.lane.b32.xlu0 %v1009, 32
    %v1013 = vpop.permute.xlu0 %1012
    %v1015 = vmul.f32 %v1008, %v1013
    %1017 = vrot.lane.b32.xlu0 %v1015, 32
    %v1018 = vpop.permute.xlu0 %1017
    %v1020 = vadd.f32 %v1010, %v1018
    %v1021 = vtanh.pop %v1020
    %1023 = vrot.lane.b32.xlu0 %v1021, 32
    %v1024 = vpop.permute.xlu0 %1023
    %v1026 = vmul.f32 %v1008, %v1024
    %1028 = vrot.lane.b32.xlu0 %v1004, 64
    %v1029 = vpop.permute.xlu0 %1028
    %1031 = vst.msk [vmem:[%s4 + $0x38] sm:$0xff] %vm61, %v1029
    %1033 = vrot.lane.b32.xlu0 %v1026, 64
    %v1034 = vpop.permute.xlu0 %1033
    %1036 = vst.msk [vmem:[%s5] sm:$0xff] %vm61, %v1034
    %1037 = vst.msk [vmem:[#allocation6] sm:$0xff] %vm61, %v1029
    %1038 = vrot.lane.b32.xlu0 %v1026, 96
    %v1039 = vpop.permute.xlu0 %1038
    %vm1041 = vcmask 523520
    %1042 = vst.msk [vmem:[#allocation6] sm:$0xff] %vm1041, %v1039
    %1044 = vrot.lane.b32.xlu0 %v998, 96
    %v1045 = vpop.permute.xlu0 %1044
    %1047 = vst.msk [vmem:[#allocation7] sm:$0xff] %vm61, %v1045
    %1048 = vst.msk [vmem:[#allocation7] sm:$0xff] %vm1041, %v1020
    // Predicated region
    $region22: #{tpu_custom_call.1} parent=1 // pred_check
      _
    $region23: #{tpu_custom_call.1} parent=1 // pred_check_branch
      %1050 = sbr.rel (0) target = $region25
    $region24: #{tpu_custom_call.1} parent=1 // pred_region
      _
    $region25: #{tpu_custom_call.1} parent=1 // pred_fallthru
      _
    // Predicated region
    $region26: #{tpu_custom_call.1} parent=1 // pred_check
      _
    $region27: #{tpu_custom_call.1} parent=1 // pred_check_branch
      %1052 = sbr.rel (0) target = $region29
    $region28: #{tpu_custom_call.1} parent=1 // pred_region
      _
    $region29: #{tpu_custom_call.1} parent=1 // pred_fallthru
      _
    // Predicated region
    $region30: #{tpu_custom_call.1} parent=1 // pred_check
      _
    $region31: #{tpu_custom_call.1} parent=1 // pred_check_branch
      %1054 = sbr.rel (0) target = $region33
    $region32: #{tpu_custom_call.1} parent=1 // pred_region
      %1056 = vsyncadd [#allocation5], 0
      %s1058 = sshll.u32 [#allocation6], 4
      %s1059 = int_to_ptr.vmem [resolvable:$true] %s1058
      %s1060 = sshll.u32 %s6, 4
      %s1061 = int_to_ptr.hbm [resolvable:$true] %s1060
      %1063 = dma.vmem_to_hbm [thread:$0]  %s1059, 128, %s1061, [#allocation5]
    $region33: #{tpu_custom_call.1} parent=1 // pred_fallthru
      _
    // Predicated region
    $region34: #{tpu_custom_call.1} parent=1 // pred_check
      _
    $region35: #{tpu_custom_call.1} parent=1 // pred_check_branch
      %1065 = sbr.rel (0) target = $region37
    $region36: #{tpu_custom_call.1} parent=1 // pred_region
      %1067 = vsyncadd [#allocation8], 0
      %s1069 = sshll.u32 [#allocation7], 4
      %s1070 = int_to_ptr.vmem [resolvable:$true] %s1069
      %s1071 = sshll.u32 %s7, 4
      %s1072 = int_to_ptr.hbm [resolvable:$true] %s1071
      %1074 = dma.vmem_to_hbm [thread:$0]  %s1070, 128, %s1072, [#allocation8]
    $region37: #{tpu_custom_call.1} parent=1 // pred_fallthru
      _
    // Predicated region
    $region38: #{tpu_custom_call.1} parent=1 // pred_check
      _
    $region39: #{tpu_custom_call.1} parent=1 // pred_check_branch
      %1076 = sbr.rel (0) target = $region41
    $region40: #{tpu_custom_call.1} parent=1 // pred_region
      _
    $region41: #{tpu_custom_call.1} parent=1 // pred_fallthru
      _
    // Predicated region
    $region42: #{tpu_custom_call.1} parent=1 // pred_check
      _
    $region43: #{tpu_custom_call.1} parent=1 // pred_check_branch
      %1078 = sbr.rel (0) target = $region45
    $region44: #{tpu_custom_call.1} parent=1 // pred_region
      _
    $region45: #{tpu_custom_call.1} parent=1 // pred_fallthru
      _
    // Predicated region
    $region46: #{tpu_custom_call.1} parent=1 // pred_check
      _
    $region47: #{tpu_custom_call.1} parent=1 // pred_check_branch
      %1080 = sbr.rel (0) target = $region49
    $region48: #{tpu_custom_call.1} parent=1 // pred_region
      %1082 = dma.done [#allocation5], 128
    $region49: #{tpu_custom_call.1} parent=1 // pred_fallthru
      _
    // Predicated region
    $region50: #{tpu_custom_call.1} parent=1 // pred_check
      _
    $region51: #{tpu_custom_call.1} parent=1 // pred_check_branch
      %1084 = sbr.rel (0) target = $region53
    $region52: #{tpu_custom_call.1} parent=1 // pred_region
      %1086 = dma.done [#allocation8], 128
    $region53: #{tpu_custom_call.1} parent=1 // pred_fallthru
      _
    %1087 = vsyncpa [#allocation4], 1
    %1088 = vsyncpa [#allocation5], 1
    %1089 = vsyncpa [#allocation8], 1

</llo_original>
